<compile_context>
chip_gen: v7x
topology: tpu7x:2x2x1
jax: 0.10.0
libtpu: 0.0.40
codegen_flags: <defaults>
</compile_context>

<pallas_src>
import functools
import math

import jax
import jax.numpy as jnp
from jax.experimental import pallas as pl
from jax.experimental.pallas import tpu as pltpu

SNAKE_EPS = 1e-9          # matches `(alpha + 1e-09).reciprocal()` in PyTorch snake
_HALO = 128               # lane-aligned halo offset inside the padded snake scratch
_DILATIONS = (1, 3, 9)


def _snake_f32(x, alpha, inv_alpha):
    # snake(x) = x + 1/(alpha+eps) * sin(alpha*x)^2  (snake(0)==0, so a
    # zero-padded halo stays a valid zero pad after snake)
    s = jnp.sin(alpha * x)
    return x + inv_alpha * s * s


def _compiler_params(block_bytes):
    vmem_limit = int(min(max(2 * block_bytes + (4 << 20), 32 << 20), 64 << 20))
    return pltpu.CompilerParams(dimension_semantics=("parallel",),
                                vmem_limit_bytes=vmem_limit)


# ----------------------------------------------------------------------------
# Kernel 1: all three ResidualUnits fused
#   (snake -> k=7 dilated conv as one (C,7C)@(7C,T) matmul -> snake -> 1x1 conv
#    -> residual add) x 3, one batch row per grid step.
# ----------------------------------------------------------------------------
def _res_units_kernel(x_ref, avec_ref, w1_ref, w2_ref, o_ref, spad_ref, col_ref,
                      *, dilations):
    C, T = o_ref.shape
    cdtype = col_ref.dtype

    # Zero the padded scratch ONCE; every unit only overwrites [_HALO, _HALO+T),
    # so the halo columns stay zero across all three units.
    spad_ref[...] = jnp.zeros_like(spad_ref)

    y = x_ref[...].astype(jnp.float32)                  # running activation (C, T)
    for i, d in enumerate(dilations):                   # static Python unroll
        alpha1 = avec_ref[6 * i + 0].astype(jnp.float32)
        inv1   = avec_ref[6 * i + 1].astype(jnp.float32)
        b1     = avec_ref[6 * i + 2].astype(jnp.float32)
        alpha2 = avec_ref[6 * i + 3].astype(jnp.float32)
        inv2   = avec_ref[6 * i + 4].astype(jnp.float32)
        b2     = avec_ref[6 * i + 5].astype(jnp.float32)

        # Snake #1, staged into the zero-padded scratch (lane-aligned store).
        s = _snake_f32(y, alpha1, inv1)
        spad_ref[:, pl.ds(_HALO, T)] = s.astype(cdtype)

        # im2col over the 7 dilated taps -> one (C, 7C) @ (7C, T) contraction.
        for k in range(7):
            off = _HALO + (k - 3) * d                   # static offset
            col_ref[pl.ds(k * C, C), :] = spad_ref[:, pl.ds(off, T)]
        h1 = jnp.dot(w1_ref[i], col_ref[...],
                     preferred_element_type=jnp.float32) + b1

        # Snake #2 -> 1x1 conv -> residual add ('same' padding => no crop).
        s2 = _snake_f32(h1, alpha2, inv2).astype(cdtype)
        h2 = jnp.dot(w2_ref[i], s2, preferred_element_type=jnp.float32) + b2
        y = y + h2

    o_ref[...] = y.astype(o_ref.dtype)


def residual_units_fused(x, avec, w1_all, w2_all, *, dilations=_DILATIONS):
    """x: (B, C, T); avec: (6*n, C, 1); w1_all: (n, C, 7C); w2_all: (n, C, C)."""
    B, C, T = x.shape
    n = len(dilations)
    cdtype = w1_all.dtype
    isz = jnp.dtype(x.dtype).itemsize
    csz = jnp.dtype(cdtype).itemsize

    flops = int(B * n * (2 * C * (7 * C) * T + 2 * C * C * T + 20 * C * T))
    transc = int(B * n * 2 * C * T)
    bytes_acc = int(isz * 2 * B * C * T + csz * (w1_all.size + w2_all.size)
                    + 4 * avec.size)
    block_bytes = int(2 * isz * 2 * C * T
                      + csz * (C * (T + 2 * _HALO) + 7 * C * T)
                      + csz * (w1_all.size + w2_all.size) + 4 * avec.size)

    kernel = functools.partial(_res_units_kernel, dilations=tuple(dilations))
    return pl.pallas_call(
        kernel,
        out_shape=jax.ShapeDtypeStruct((B, C, T), x.dtype),
        grid_spec=pltpu.PrefetchScalarGridSpec(
            num_scalar_prefetch=0,
            grid=(B,),
            in_specs=[
                pl.BlockSpec((None, C, T), lambda b: (b, 0, 0)),       # x (batch squeezed)
                pl.BlockSpec((6 * n, C, 1), lambda b: (0, 0, 0)),      # packed snake params + biases
                pl.BlockSpec((n, C, 7 * C), lambda b: (0, 0, 0)),      # flattened conv7 weights
                pl.BlockSpec((n, C, C), lambda b: (0, 0, 0)),          # conv1x1 weights
            ],
            out_specs=pl.BlockSpec((None, C, T), lambda b: (b, 0, 0)),
            scratch_shapes=[
                pltpu.VMEM((C, T + 2 * _HALO), cdtype),                # zero-padded snake
                pltpu.VMEM((7 * C, T), cdtype),                        # im2col taps
            ],
        ),
        compiler_params=_compiler_params(block_bytes),
        cost_estimate=pl.CostEstimate(flops=flops, transcendentals=transc,
                                      bytes_accessed=bytes_acc),
    )(x, avec, w1_all, w2_all)


# ----------------------------------------------------------------------------
# Kernel 2: final Snake1d + strided WNConv1d (kernel_size = 2*stride).
# The wrapper phase-reshapes x so the kernel sees a stride-1 problem; both
# phase taps are folded into a single (Cout, 2Cs) @ (2Cs, T_out) contraction.
# ----------------------------------------------------------------------------
def _snake_down_conv_kernel(z_ref, av_ref, w_ref, b_ref, o_ref):
    Cout, T_out = o_ref.shape
    cdtype = w_ref.dtype
    z = z_ref[...].astype(jnp.float32)                  # (Cs, J)
    alpha = av_ref[0].astype(jnp.float32)
    inv = av_ref[1].astype(jnp.float32)
    s = _snake_f32(z, alpha, inv).astype(cdtype)
    # TODO(synk): the offset-1 slice still costs a lane realignment; an
    # XLU-roll-based staging would remove it.
    s2 = jnp.concatenate([s[:, :T_out], s[:, 1:T_out + 1]], axis=0)   # (2Cs, T_out)
    out = jnp.dot(w_ref[...], s2, preferred_element_type=jnp.float32)
    out = out + b_ref[...].astype(jnp.float32)
    o_ref[...] = out.astype(o_ref.dtype)


def snake_down_conv(x, alpha, w, b, *, stride):
    """x: (B, Cin, T); w: (Cout, Cin, 2*stride) effective weight; b: (Cout,)."""
    B, Cin, T = x.shape
    Cout, _, K = w.shape
    assert K == 2 * stride
    p = math.ceil(stride / 2)
    x_pad = jnp.pad(x, ((0, 0), (0, 0), (p, p)))
    Tp = T + 2 * p
    J = Tp // stride
    x_pad = x_pad[:, :, : J * stride]                   # trailing remainder never read
    # Phase (space-to-depth): z[b, c*stride + q, j] = x_pad[b, c, j*stride + q]
    # TODO(synk): fold this transpose into in-kernel strided reads to save one
    # activation round trip through HBM.
    z = x_pad.reshape(B, Cin, J, stride).transpose(0, 1, 3, 2).reshape(B, Cin * stride, J)
    Cs = Cin * stride
    T_out = J - 1

    cdtype = jnp.bfloat16 if x.dtype == jnp.bfloat16 else jnp.float32
    alpha_exp = jnp.repeat(alpha.reshape(Cin), stride).astype(jnp.float32)
    inv_exp = 1.0 / (alpha_exp + SNAKE_EPS)
    av = jnp.stack([alpha_exp, inv_exp], axis=0).reshape(2, Cs, 1)
    wa = w[:, :, :stride].reshape(Cout, Cs)             # taps 0 .. stride-1
    wb = w[:, :, stride:].reshape(Cout, Cs)             # taps stride .. 2*stride-1
    w_full = jnp.concatenate([wa, wb], axis=1).astype(cdtype)   # (Cout, 2Cs)

    isz = jnp.dtype(x.dtype).itemsize
    flops = int(B * (2 * Cout * 2 * Cs * T_out + 10 * Cs * J))
    transc = int(B * Cs * J)
    bytes_acc = int(isz * (B * Cs * J + B * Cout * T_out)
                    + 4 * (w_full.size + 2 * Cs + Cout))
    block_bytes = int(2 * isz * (Cs * J + Cout * T_out)
                      + 4 * (w_full.size + 2 * Cs + Cout))

    return pl.pallas_call(
        _snake_down_conv_kernel,
        out_shape=jax.ShapeDtypeStruct((B, Cout, T_out), x.dtype),
        grid_spec=pltpu.PrefetchScalarGridSpec(
            num_scalar_prefetch=0,
            grid=(B,),
            in_specs=[
                pl.BlockSpec((None, Cs, J), lambda bb: (bb, 0, 0)),    # z (batch squeezed)
                pl.BlockSpec((2, Cs, 1), lambda bb: (0, 0, 0)),        # alpha, 1/(alpha+eps)
                pl.BlockSpec((Cout, 2 * Cs), lambda bb: (0, 0)),       # folded taps
                pl.BlockSpec((Cout, 1), lambda bb: (0, 0)),            # bias
            ],
            out_specs=pl.BlockSpec((None, Cout, T_out), lambda bb: (bb, 0, 0)),
        ),
        compiler_params=_compiler_params(block_bytes),
        cost_estimate=pl.CostEstimate(flops=flops, transcendentals=transc,
                                      bytes_accessed=bytes_acc),
    )(z, av, w_full, b.reshape(Cout, 1))


# ----------------------------------------------------------------------------
# Parameter-side weight-norm and the full EncoderBlock forward.
# ----------------------------------------------------------------------------
def weight_norm_weight(v, g):
    # PyTorch weight_norm(dim=0): w = g * v / ||v|| with the norm over (in, k).
    norm = jnp.sqrt(jnp.sum(v * v, axis=(1, 2), keepdims=True))
    return (g.reshape(-1, 1, 1) / norm) * v


def encoder_block_forward(x, params, stride):
    B, C, T = x.shape
    cdtype = jnp.bfloat16 if x.dtype == jnp.bfloat16 else jnp.float32

    avec_rows, w1_list, w2_list = [], [], []
    for i in range(3):
        p = params[f"ru{i}"]
        w1 = weight_norm_weight(p["w1_v"], p["w1_g"])               # (C, C, 7)
        w2 = weight_norm_weight(p["w2_v"], p["w2_g"])               # (C, C, 1)
        a1 = p["alpha1"].reshape(C).astype(jnp.float32)
        a2 = p["alpha2"].reshape(C).astype(jnp.float32)
        avec_rows += [a1, 1.0 / (a1 + SNAKE_EPS),
                      p["b1"].reshape(C).astype(jnp.float32),
                      a2, 1.0 / (a2 + SNAKE_EPS),
                      p["b2"].reshape(C).astype(jnp.float32)]
        # w1flat[o, k*C + i] = w1[o, i, k]  (matches the in-kernel im2col layout)
        w1_list.append(jnp.transpose(w1, (0, 2, 1)).reshape(C, 7 * C))
        w2_list.append(w2[:, :, 0])
    avec = jnp.stack(avec_rows, axis=0).reshape(6 * 3, C, 1)
    w1_all = jnp.stack(w1_list, axis=0).astype(cdtype)              # (3, C, 7C)
    w2_all = jnp.stack(w2_list, axis=0).astype(cdtype)              # (3, C, C)

    y = residual_units_fused(x, avec, w1_all, w2_all, dilations=_DILATIONS)

    pf = params["final"]
    wf = weight_norm_weight(pf["w_v"], pf["w_g"])
    return snake_down_conv(y, pf["alpha"], wf, pf["b"], stride=stride)


# ----------------------------------------------------------------------------
# Pure-JAX reference (same math as the PyTorch forward).
# ----------------------------------------------------------------------------
def _snake_ref(x, alpha):
    return x + (1.0 / (alpha + SNAKE_EPS)) * jnp.sin(alpha * x) ** 2


def _conv1d_ref(x, w, b, stride=1, dilation=1, padding=0):
    y = jax.lax.conv_general_dilated(
        x, w, window_strides=(stride,), padding=[(padding, padding)],
        rhs_dilation=(dilation,), dimension_numbers=("NCH", "OIH", "NCH"),
        precision=jax.lax.Precision.HIGHEST)
    return y + b.reshape(1, -1, 1)


def encoder_block_ref(x, params, stride):
    y = x
    for i, dil in enumerate(_DILATIONS):
        p = params[f"ru{i}"]
        w1 = weight_norm_weight(p["w1_v"], p["w1_g"])
        w2 = weight_norm_weight(p["w2_v"], p["w2_g"])
        h = _snake_ref(y, p["alpha1"].reshape(1, -1, 1))
        h = _conv1d_ref(h, w1, p["b1"], dilation=dil, padding=(7 - 1) * dil // 2)
        h = _snake_ref(h, p["alpha2"].reshape(1, -1, 1))
        h = _conv1d_ref(h, w2, p["b2"])
        y = y + h                                      # same length -> no crop
    pf = params["final"]
    wf = weight_norm_weight(pf["w_v"], pf["w_g"])
    h = _snake_ref(y, pf["alpha"].reshape(1, -1, 1))
    return _conv1d_ref(h, wf, pf["b"], stride=stride, padding=math.ceil(stride / 2))


if __name__ == "__main__":
    B, dim, T, stride = 2, 16, 128, 2
    C = dim // 2                                       # EncoderBlock input channels

    key = jax.random.PRNGKey(0)
    kx, kp = jax.random.split(key)
    x = jax.random.normal(kx, (B, C, T), dtype=jnp.float32)

    def conv_params(k, cout, cin, ksize):
        kv, kg, kb = jax.random.split(k, 3)
        v = 0.2 * jax.random.normal(kv, (cout, cin, ksize), jnp.float32)
        g = 0.5 + jax.random.uniform(kg, (cout,), jnp.float32)
        b = 0.1 * jax.random.normal(kb, (cout,), jnp.float32)
        return v, g, b

    keys = jax.random.split(kp, 4)
    params = {}
    for i in range(3):
        k1, k2, ka = jax.random.split(keys[i], 3)
        w1_v, w1_g, b1 = conv_params(k1, C, C, 7)
        w2_v, w2_g, b2 = conv_params(k2, C, C, 1)
        ka1, ka2 = jax.random.split(ka)
        params[f"ru{i}"] = dict(
            alpha1=0.5 + jax.random.uniform(ka1, (C,), dtype=jnp.float32),
            w1_v=w1_v, w1_g=w1_g, b1=b1,
            alpha2=0.5 + jax.random.uniform(ka2, (C,), dtype=jnp.float32),
            w2_v=w2_v, w2_g=w2_g, b2=b2)
    kf, kaf = jax.random.split(keys[3])
    wf_v, wf_g, bf = conv_params(kf, dim, C, 2 * stride)
    params["final"] = dict(
        alpha=0.5 + jax.random.uniform(kaf, (C,), dtype=jnp.float32),
        w_v=wf_v, w_g=wf_g, b=bf)

    fwd = jax.jit(functools.partial(encoder_block_forward, stride=stride))
    out = jax.block_until_ready(fwd(x, params))

    ref = encoder_block_ref(x, params, stride)
    assert out.shape == ref.shape == (B, dim, T // stride), (out.shape, ref.shape)
    max_err = jnp.max(jnp.abs(out - ref))
    if not jnp.allclose(out, ref, atol=2e-3, rtol=2e-3):
        raise AssertionError(f"mismatch vs reference, max abs err = {max_err}")
    print("KERNEL_OK")
</pallas_src>

<mosaic_0001>
module attributes {stable_mosaic.version = 11 : i64} {
  func.func @_res_units_kernel(%arg0: i32, %arg1: memref<1x8x128xf32, #tpu.memory_space<vmem>>, %arg2: memref<18x8x1xf32, #tpu.memory_space<vmem>>, %arg3: memref<3x8x56xf32, #tpu.memory_space<vmem>>, %arg4: memref<3x8x8xf32, #tpu.memory_space<vmem>>, %arg5: memref<1x8x128xf32, #tpu.memory_space<vmem>>, %arg6: memref<8x384xf32, #tpu.memory_space<vmem>>, %arg7: memref<56x128xf32, #tpu.memory_space<vmem>>) attributes {dimension_semantics = [#tpu.dimension_semantics<parallel>], iteration_bounds = array<i64: 2>, scalar_prefetch = 0 : i64, scratch_operands = 2 : i64, tpu.core_type = #tpu.core_type<tc>, window_params = [{transform_indices = @transform_0, window_bounds = array<i64: 1, 8, 128>}, {pipeline_mode = #tpu.pipeline_mode<synchronous>, transform_indices = @transform_1, window_bounds = array<i64: 18, 8, 1>}, {pipeline_mode = #tpu.pipeline_mode<synchronous>, transform_indices = @transform_2, window_bounds = array<i64: 3, 8, 56>}, {pipeline_mode = #tpu.pipeline_mode<synchronous>, transform_indices = @transform_3, window_bounds = array<i64: 3, 8, 8>}, {transform_indices = @transform_4, window_bounds = array<i64: 1, 8, 128>}]} {
    %cst = arith.constant 0.000000e+00 : f32
    %0 = vector.broadcast %cst : f32 to vector<8x384xf32>
    %c0 = arith.constant 0 : index
    %c0_0 = arith.constant 0 : index
    %1 = vector.load %arg6[%c0, %c0_0] : memref<8x384xf32, #tpu.memory_space<vmem>>, vector<8x384xf32>
    tpu.vector_store %arg6[%c0, %c0_0], %0 {strides = array<i32>} : memref<8x384xf32, #tpu.memory_space<vmem>>, vector<8x384xf32>,
    %c0_1 = arith.constant 0 : index
    %c0_2 = arith.constant 0 : index
    %c0_3 = arith.constant 0 : index
    %2 = vector.load %arg1[%c0_1, %c0_2, %c0_3] : memref<1x8x128xf32, #tpu.memory_space<vmem>>, vector<1x8x128xf32>
    %3 = vector.shape_cast %2 : vector<1x8x128xf32> to vector<8x128xf32>
    %c0_4 = arith.constant 0 : index
    %c0_5 = arith.constant 0 : index
    %c0_6 = arith.constant 0 : index
    %4 = vector.load %arg2[%c0_4, %c0_5, %c0_6] : memref<18x8x1xf32, #tpu.memory_space<vmem>>, vector<1x8x1xf32>
    %5 = vector.shape_cast %4 : vector<1x8x1xf32> to vector<8x1xf32>
    %c1 = arith.constant 1 : index
    %c0_7 = arith.constant 0 : index
    %c0_8 = arith.constant 0 : index
    %6 = vector.load %arg2[%c1, %c0_7, %c0_8] : memref<18x8x1xf32, #tpu.memory_space<vmem>>, vector<1x8x1xf32>
    %7 = vector.shape_cast %6 : vector<1x8x1xf32> to vector<8x1xf32>
    %c2 = arith.constant 2 : index
    %c0_9 = arith.constant 0 : index
    %c0_10 = arith.constant 0 : index
    %8 = vector.load %arg2[%c2, %c0_9, %c0_10] : memref<18x8x1xf32, #tpu.memory_space<vmem>>, vector<1x8x1xf32>
    %9 = vector.shape_cast %8 : vector<1x8x1xf32> to vector<8x1xf32>
    %c3 = arith.constant 3 : index
    %c0_11 = arith.constant 0 : index
    %c0_12 = arith.constant 0 : index
    %10 = vector.load %arg2[%c3, %c0_11, %c0_12] : memref<18x8x1xf32, #tpu.memory_space<vmem>>, vector<1x8x1xf32>
    %11 = vector.shape_cast %10 : vector<1x8x1xf32> to vector<8x1xf32>
    %c4 = arith.constant 4 : index
    %c0_13 = arith.constant 0 : index
    %c0_14 = arith.constant 0 : index
    %12 = vector.load %arg2[%c4, %c0_13, %c0_14] : memref<18x8x1xf32, #tpu.memory_space<vmem>>, vector<1x8x1xf32>
    %13 = vector.shape_cast %12 : vector<1x8x1xf32> to vector<8x1xf32>
    %c5 = arith.constant 5 : index
    %c0_15 = arith.constant 0 : index
    %c0_16 = arith.constant 0 : index
    %14 = vector.load %arg2[%c5, %c0_15, %c0_16] : memref<18x8x1xf32, #tpu.memory_space<vmem>>, vector<1x8x1xf32>
    %15 = vector.shape_cast %14 : vector<1x8x1xf32> to vector<8x1xf32>
    %16 = vector.broadcast %5 : vector<8x1xf32> to vector<8x128xf32>
    %17 = arith.mulf %16, %3 : vector<8x128xf32>
    %18 = math.sin %17 : vector<8x128xf32>
    %19 = vector.broadcast %7 : vector<8x1xf32> to vector<8x128xf32>
    %20 = arith.mulf %19, %18 : vector<8x128xf32>
    %21 = arith.mulf %20, %18 : vector<8x128xf32>
    %22 = arith.addf %3, %21 : vector<8x128xf32>
    %c0_17 = arith.constant 0 : index
    %c128 = arith.constant 128 : index
    %23 = vector.load %arg6[%c0_17, %c128] : memref<8x384xf32, #tpu.memory_space<vmem>>, vector<8x128xf32>
    tpu.vector_store %arg6[%c0_17, %c128], %22 {strides = array<i32>} : memref<8x384xf32, #tpu.memory_space<vmem>>, vector<8x128xf32>,
    %c0_18 = arith.constant 0 : index
    %c125 = arith.constant 125 : index
    %24 = vector.load %arg6[%c0_18, %c125] : memref<8x384xf32, #tpu.memory_space<vmem>>, vector<8x128xf32>
    %c0_19 = arith.constant 0 : index
    %c0_20 = arith.constant 0 : index
    %25 = vector.load %arg7[%c0_19, %c0_20] : memref<56x128xf32, #tpu.memory_space<vmem>>, vector<8x128xf32>
    tpu.vector_store %arg7[%c0_19, %c0_20], %24 {strides = array<i32>} : memref<56x128xf32, #tpu.memory_space<vmem>>, vector<8x128xf32>,
    %c0_21 = arith.constant 0 : index
    %c126 = arith.constant 126 : index
    %26 = vector.load %arg6[%c0_21, %c126] : memref<8x384xf32, #tpu.memory_space<vmem>>, vector<8x128xf32>
    %c8 = arith.constant 8 : index
    %c0_22 = arith.constant 0 : index
    %27 = vector.load %arg7[%c8, %c0_22] : memref<56x128xf32, #tpu.memory_space<vmem>>, vector<8x128xf32>
    tpu.vector_store %arg7[%c8, %c0_22], %26 {strides = array<i32>} : memref<56x128xf32, #tpu.memory_space<vmem>>, vector<8x128xf32>,
    %c0_23 = arith.constant 0 : index
    %c127 = arith.constant 127 : index
    %28 = vector.load %arg6[%c0_23, %c127] : memref<8x384xf32, #tpu.memory_space<vmem>>, vector<8x128xf32>
    %c16 = arith.constant 16 : index
    %c0_24 = arith.constant 0 : index
    %29 = vector.load %arg7[%c16, %c0_24] : memref<56x128xf32, #tpu.memory_space<vmem>>, vector<8x128xf32>
    tpu.vector_store %arg7[%c16, %c0_24], %28 {strides = array<i32>} : memref<56x128xf32, #tpu.memory_space<vmem>>, vector<8x128xf32>,
    %c0_25 = arith.constant 0 : index
    %c128_26 = arith.constant 128 : index
    %30 = vector.load %arg6[%c0_25, %c128_26] : memref<8x384xf32, #tpu.memory_space<vmem>>, vector<8x128xf32>
    %c24 = arith.constant 24 : index
    %c0_27 = arith.constant 0 : index
    %31 = vector.load %arg7[%c24, %c0_27] : memref<56x128xf32, #tpu.memory_space<vmem>>, vector<8x128xf32>
    tpu.vector_store %arg7[%c24, %c0_27], %30 {strides = array<i32>} : memref<56x128xf32, #tpu.memory_space<vmem>>, vector<8x128xf32>,
    %c0_28 = arith.constant 0 : index
    %c129 = arith.constant 129 : index
    %32 = vector.load %arg6[%c0_28, %c129] : memref<8x384xf32, #tpu.memory_space<vmem>>, vector<8x128xf32>
    %c32 = arith.constant 32 : index
    %c0_29 = arith.constant 0 : index
    %33 = vector.load %arg7[%c32, %c0_29] : memref<56x128xf32, #tpu.memory_space<vmem>>, vector<8x128xf32>
    tpu.vector_store %arg7[%c32, %c0_29], %32 {strides = array<i32>} : memref<56x128xf32, #tpu.memory_space<vmem>>, vector<8x128xf32>,
    %c0_30 = arith.constant 0 : index
    %c130 = arith.constant 130 : index
    %34 = vector.load %arg6[%c0_30, %c130] : memref<8x384xf32, #tpu.memory_space<vmem>>, vector<8x128xf32>
    %c40 = arith.constant 40 : index
    %c0_31 = arith.constant 0 : index
    %35 = vector.load %arg7[%c40, %c0_31] : memref<56x128xf32, #tpu.memory_space<vmem>>, vector<8x128xf32>
    tpu.vector_store %arg7[%c40, %c0_31], %34 {strides = array<i32>} : memref<56x128xf32, #tpu.memory_space<vmem>>, vector<8x128xf32>,
    %c0_32 = arith.constant 0 : index
    %c131 = arith.constant 131 : index
    %36 = vector.load %arg6[%c0_32, %c131] : memref<8x384xf32, #tpu.memory_space<vmem>>, vector<8x128xf32>
    %c48 = arith.constant 48 : index
    %c0_33 = arith.constant 0 : index
    %37 = vector.load %arg7[%c48, %c0_33] : memref<56x128xf32, #tpu.memory_space<vmem>>, vector<8x128xf32>
    tpu.vector_store %arg7[%c48, %c0_33], %36 {strides = array<i32>} : memref<56x128xf32, #tpu.memory_space<vmem>>, vector<8x128xf32>,
    %c0_34 = arith.constant 0 : index
    %c0_35 = arith.constant 0 : index
    %c0_36 = arith.constant 0 : index
    %38 = vector.load %arg3[%c0_34, %c0_35, %c0_36] : memref<3x8x56xf32, #tpu.memory_space<vmem>>, vector<1x8x56xf32>
    %39 = vector.shape_cast %38 : vector<1x8x56xf32> to vector<8x56xf32>
    %c0_37 = arith.constant 0 : index
    %c0_38 = arith.constant 0 : index
    %40 = vector.load %arg7[%c0_37, %c0_38] : memref<56x128xf32, #tpu.memory_space<vmem>>, vector<56x128xf32>
    %cst_39 = arith.constant dense<0.000000e+00> : vector<8x128xf32>
    %41 = tpu.matmul %39, %40, %cst_39 {dimension_numbers = #tpu.dot_dimension_numbers<[1], [0], [0], [1], [0, 0, 1, 1], [], []>} : vector<8x56xf32>, vector<56x128xf32>, vector<8x128xf32> -> vector<8x128xf32>
    %42 = vector.broadcast %9 : vector<8x1xf32> to vector<8x128xf32>
    %43 = arith.addf %41, %42 : vector<8x128xf32>
    %44 = vector.broadcast %11 : vector<8x1xf32> to vector<8x128xf32>
    %45 = arith.mulf %44, %43 : vector<8x128xf32>
    %46 = math.sin %45 : vector<8x128xf32>
    %47 = vector.broadcast %13 : vector<8x1xf32> to vector<8x128xf32>
    %48 = arith.mulf %47, %46 : vector<8x128xf32>
    %49 = arith.mulf %48, %46 : vector<8x128xf32>
    %50 = arith.addf %43, %49 : vector<8x128xf32>
    %c0_40 = arith.constant 0 : index
    %c0_41 = arith.constant 0 : index
    %c0_42 = arith.constant 0 : index
    %51 = vector.load %arg4[%c0_40, %c0_41, %c0_42] : memref<3x8x8xf32, #tpu.memory_space<vmem>>, vector<1x8x8xf32>
    %52 = vector.shape_cast %51 : vector<1x8x8xf32> to vector<8x8xf32>
    %cst_43 = arith.constant dense<0.000000e+00> : vector<8x128xf32>
    %53 = tpu.matmul %52, %50, %cst_43 {dimension_numbers = #tpu.dot_dimension_numbers<[1], [0], [0], [1], [0, 0, 1, 1], [], []>} : vector<8x8xf32>, vector<8x128xf32>, vector<8x128xf32> -> vector<8x128xf32>
    %54 = vector.broadcast %15 : vector<8x1xf32> to vector<8x128xf32>
    %55 = arith.addf %53, %54 : vector<8x128xf32>
    %56 = arith.addf %3, %55 : vector<8x128xf32>
    %c6 = arith.constant 6 : index
    %c0_44 = arith.constant 0 : index
    %c0_45 = arith.constant 0 : index
    %57 = vector.load %arg2[%c6, %c0_44, %c0_45] : memref<18x8x1xf32, #tpu.memory_space<vmem>>, vector<1x8x1xf32>
    %58 = vector.shape_cast %57 : vector<1x8x1xf32> to vector<8x1xf32>
    %c7 = arith.constant 7 : index
    %c0_46 = arith.constant 0 : index
    %c0_47 = arith.constant 0 : index
    %59 = vector.load %arg2[%c7, %c0_46, %c0_47] : memref<18x8x1xf32, #tpu.memory_space<vmem>>, vector<1x8x1xf32>
    %60 = vector.shape_cast %59 : vector<1x8x1xf32> to vector<8x1xf32>
    %c8_48 = arith.constant 8 : index
    %c0_49 = arith.constant 0 : index
    %c0_50 = arith.constant 0 : index
    %61 = vector.load %arg2[%c8_48, %c0_49, %c0_50] : memref<18x8x1xf32, #tpu.memory_space<vmem>>, vector<1x8x1xf32>
    %62 = vector.shape_cast %61 : vector<1x8x1xf32> to vector<8x1xf32>
    %c9 = arith.constant 9 : index
    %c0_51 = arith.constant 0 : index
    %c0_52 = arith.constant 0 : index
    %63 = vector.load %arg2[%c9, %c0_51, %c0_52] : memref<18x8x1xf32, #tpu.memory_space<vmem>>, vector<1x8x1xf32>
    %64 = vector.shape_cast %63 : vector<1x8x1xf32> to vector<8x1xf32>
    %c10 = arith.constant 10 : index
    %c0_53 = arith.constant 0 : index
    %c0_54 = arith.constant 0 : index
    %65 = vector.load %arg2[%c10, %c0_53, %c0_54] : memref<18x8x1xf32, #tpu.memory_space<vmem>>, vector<1x8x1xf32>
    %66 = vector.shape_cast %65 : vector<1x8x1xf32> to vector<8x1xf32>
    %c11 = arith.constant 11 : index
    %c0_55 = arith.constant 0 : index
    %c0_56 = arith.constant 0 : index
    %67 = vector.load %arg2[%c11, %c0_55, %c0_56] : memref<18x8x1xf32, #tpu.memory_space<vmem>>, vector<1x8x1xf32>
    %68 = vector.shape_cast %67 : vector<1x8x1xf32> to vector<8x1xf32>
    %69 = vector.broadcast %58 : vector<8x1xf32> to vector<8x128xf32>
    %70 = arith.mulf %69, %56 : vector<8x128xf32>
    %71 = math.sin %70 : vector<8x128xf32>
    %72 = vector.broadcast %60 : vector<8x1xf32> to vector<8x128xf32>
    %73 = arith.mulf %72, %71 : vector<8x128xf32>
    %74 = arith.mulf %73, %71 : vector<8x128xf32>
    %75 = arith.addf %56, %74 : vector<8x128xf32>
    %c0_57 = arith.constant 0 : index
    %c128_58 = arith.constant 128 : index
    %76 = vector.load %arg6[%c0_57, %c128_58] : memref<8x384xf32, #tpu.memory_space<vmem>>, vector<8x128xf32>
    tpu.vector_store %arg6[%c0_57, %c128_58], %75 {strides = array<i32>} : memref<8x384xf32, #tpu.memory_space<vmem>>, vector<8x128xf32>,
    %c0_59 = arith.constant 0 : index
    %c119 = arith.constant 119 : index
    %77 = vector.load %arg6[%c0_59, %c119] : memref<8x384xf32, #tpu.memory_space<vmem>>, vector<8x128xf32>
    %c0_60 = arith.constant 0 : index
    %c0_61 = arith.constant 0 : index
    %78 = vector.load %arg7[%c0_60, %c0_61] : memref<56x128xf32, #tpu.memory_space<vmem>>, vector<8x128xf32>
    tpu.vector_store %arg7[%c0_60, %c0_61], %77 {strides = array<i32>} : memref<56x128xf32, #tpu.memory_space<vmem>>, vector<8x128xf32>,
    %c0_62 = arith.constant 0 : index
    %c122 = arith.constant 122 : index
    %79 = vector.load %arg6[%c0_62, %c122] : memref<8x384xf32, #tpu.memory_space<vmem>>, vector<8x128xf32>
    %c8_63 = arith.constant 8 : index
    %c0_64 = arith.constant 0 : index
    %80 = vector.load %arg7[%c8_63, %c0_64] : memref<56x128xf32, #tpu.memory_space<vmem>>, vector<8x128xf32>
    tpu.vector_store %arg7[%c8_63, %c0_64], %79 {strides = array<i32>} : memref<56x128xf32, #tpu.memory_space<vmem>>, vector<8x128xf32>,
    %c0_65 = arith.constant 0 : index
    %c125_66 = arith.constant 125 : index
    %81 = vector.load %arg6[%c0_65, %c125_66] : memref<8x384xf32, #tpu.memory_space<vmem>>, vector<8x128xf32>
    %c16_67 = arith.constant 16 : index
    %c0_68 = arith.constant 0 : index
    %82 = vector.load %arg7[%c16_67, %c0_68] : memref<56x128xf32, #tpu.memory_space<vmem>>, vector<8x128xf32>
    tpu.vector_store %arg7[%c16_67, %c0_68], %81 {strides = array<i32>} : memref<56x128xf32, #tpu.memory_space<vmem>>, vector<8x128xf32>,
    %c0_69 = arith.constant 0 : index
    %c128_70 = arith.constant 128 : index
    %83 = vector.load %arg6[%c0_69, %c128_70] : memref<8x384xf32, #tpu.memory_space<vmem>>, vector<8x128xf32>
    %c24_71 = arith.constant 24 : index
    %c0_72 = arith.constant 0 : index
    %84 = vector.load %arg7[%c24_71, %c0_72] : memref<56x128xf32, #tpu.memory_space<vmem>>, vector<8x128xf32>
    tpu.vector_store %arg7[%c24_71, %c0_72], %83 {strides = array<i32>} : memref<56x128xf32, #tpu.memory_space<vmem>>, vector<8x128xf32>,
    %c0_73 = arith.constant 0 : index
    %c131_74 = arith.constant 131 : index
    %85 = vector.load %arg6[%c0_73, %c131_74] : memref<8x384xf32, #tpu.memory_space<vmem>>, vector<8x128xf32>
    %c32_75 = arith.constant 32 : index
    %c0_76 = arith.constant 0 : index
    %86 = vector.load %arg7[%c32_75, %c0_76] : memref<56x128xf32, #tpu.memory_space<vmem>>, vector<8x128xf32>
    tpu.vector_store %arg7[%c32_75, %c0_76], %85 {strides = array<i32>} : memref<56x128xf32, #tpu.memory_space<vmem>>, vector<8x128xf32>,
    %c0_77 = arith.constant 0 : index
    %c134 = arith.constant 134 : index
    %87 = vector.load %arg6[%c0_77, %c134] : memref<8x384xf32, #tpu.memory_space<vmem>>, vector<8x128xf32>
    %c40_78 = arith.constant 40 : index
    %c0_79 = arith.constant 0 : index
    %88 = vector.load %arg7[%c40_78, %c0_79] : memref<56x128xf32, #tpu.memory_space<vmem>>, vector<8x128xf32>
    tpu.vector_store %arg7[%c40_78, %c0_79], %87 {strides = array<i32>} : memref<56x128xf32, #tpu.memory_space<vmem>>, vector<8x128xf32>,
    %c0_80 = arith.constant 0 : index
    %c137 = arith.constant 137 : index
    %89 = vector.load %arg6[%c0_80, %c137] : memref<8x384xf32, #tpu.memory_space<vmem>>, vector<8x128xf32>
    %c48_81 = arith.constant 48 : index
    %c0_82 = arith.constant 0 : index
    %90 = vector.load %arg7[%c48_81, %c0_82] : memref<56x128xf32, #tpu.memory_space<vmem>>, vector<8x128xf32>
    tpu.vector_store %arg7[%c48_81, %c0_82], %89 {strides = array<i32>} : memref<56x128xf32, #tpu.memory_space<vmem>>, vector<8x128xf32>,
    %c1_83 = arith.constant 1 : index
    %c0_84 = arith.constant 0 : index
    %c0_85 = arith.constant 0 : index
    %91 = vector.load %arg3[%c1_83, %c0_84, %c0_85] : memref<3x8x56xf32, #tpu.memory_space<vmem>>, vector<1x8x56xf32>
    %92 = vector.shape_cast %91 : vector<1x8x56xf32> to vector<8x56xf32>
    %c0_86 = arith.constant 0 : index
    %c0_87 = arith.constant 0 : index
    %93 = vector.load %arg7[%c0_86, %c0_87] : memref<56x128xf32, #tpu.memory_space<vmem>>, vector<56x128xf32>
    %cst_88 = arith.constant dense<0.000000e+00> : vector<8x128xf32>
    %94 = tpu.matmul %92, %93, %cst_88 {dimension_numbers = #tpu.dot_dimension_numbers<[1], [0], [0], [1], [0, 0, 1, 1], [], []>} : vector<8x56xf32>, vector<56x128xf32>, vector<8x128xf32> -> vector<8x128xf32>
    %95 = vector.broadcast %62 : vector<8x1xf32> to vector<8x128xf32>
    %96 = arith.addf %94, %95 : vector<8x128xf32>
    %97 = vector.broadcast %64 : vector<8x1xf32> to vector<8x128xf32>
    %98 = arith.mulf %97, %96 : vector<8x128xf32>
    %99 = math.sin %98 : vector<8x128xf32>
    %100 = vector.broadcast %66 : vector<8x1xf32> to vector<8x128xf32>
    %101 = arith.mulf %100, %99 : vector<8x128xf32>
    %102 = arith.mulf %101, %99 : vector<8x128xf32>
    %103 = arith.addf %96, %102 : vector<8x128xf32>
    %c1_89 = arith.constant 1 : index
    %c0_90 = arith.constant 0 : index
    %c0_91 = arith.constant 0 : index
    %104 = vector.load %arg4[%c1_89, %c0_90, %c0_91] : memref<3x8x8xf32, #tpu.memory_space<vmem>>, vector<1x8x8xf32>
    %105 = vector.shape_cast %104 : vector<1x8x8xf32> to vector<8x8xf32>
    %cst_92 = arith.constant dense<0.000000e+00> : vector<8x128xf32>
    %106 = tpu.matmul %105, %103, %cst_92 {dimension_numbers = #tpu.dot_dimension_numbers<[1], [0], [0], [1], [0, 0, 1, 1], [], []>} : vector<8x8xf32>, vector<8x128xf32>, vector<8x128xf32> -> vector<8x128xf32>
    %107 = vector.broadcast %68 : vector<8x1xf32> to vector<8x128xf32>
    %108 = arith.addf %106, %107 : vector<8x128xf32>
    %109 = arith.addf %56, %108 : vector<8x128xf32>
    %c12 = arith.constant 12 : index
    %c0_93 = arith.constant 0 : index
    %c0_94 = arith.constant 0 : index
    %110 = vector.load %arg2[%c12, %c0_93, %c0_94] : memref<18x8x1xf32, #tpu.memory_space<vmem>>, vector<1x8x1xf32>
    %111 = vector.shape_cast %110 : vector<1x8x1xf32> to vector<8x1xf32>
    %c13 = arith.constant 13 : index
    %c0_95 = arith.constant 0 : index
    %c0_96 = arith.constant 0 : index
    %112 = vector.load %arg2[%c13, %c0_95, %c0_96] : memref<18x8x1xf32, #tpu.memory_space<vmem>>, vector<1x8x1xf32>
    %113 = vector.shape_cast %112 : vector<1x8x1xf32> to vector<8x1xf32>
    %c14 = arith.constant 14 : index
    %c0_97 = arith.constant 0 : index
    %c0_98 = arith.constant 0 : index
    %114 = vector.load %arg2[%c14, %c0_97, %c0_98] : memref<18x8x1xf32, #tpu.memory_space<vmem>>, vector<1x8x1xf32>
    %115 = vector.shape_cast %114 : vector<1x8x1xf32> to vector<8x1xf32>
    %c15 = arith.constant 15 : index
    %c0_99 = arith.constant 0 : index
    %c0_100 = arith.constant 0 : index
    %116 = vector.load %arg2[%c15, %c0_99, %c0_100] : memref<18x8x1xf32, #tpu.memory_space<vmem>>, vector<1x8x1xf32>
    %117 = vector.shape_cast %116 : vector<1x8x1xf32> to vector<8x1xf32>
    %c16_101 = arith.constant 16 : index
    %c0_102 = arith.constant 0 : index
    %c0_103 = arith.constant 0 : index
    %118 = vector.load %arg2[%c16_101, %c0_102, %c0_103] : memref<18x8x1xf32, #tpu.memory_space<vmem>>, vector<1x8x1xf32>
    %119 = vector.shape_cast %118 : vector<1x8x1xf32> to vector<8x1xf32>
    %c17 = arith.constant 17 : index
    %c0_104 = arith.constant 0 : index
    %c0_105 = arith.constant 0 : index
    %120 = vector.load %arg2[%c17, %c0_104, %c0_105] : memref<18x8x1xf32, #tpu.memory_space<vmem>>, vector<1x8x1xf32>
    %121 = vector.shape_cast %120 : vector<1x8x1xf32> to vector<8x1xf32>
    %122 = vector.broadcast %111 : vector<8x1xf32> to vector<8x128xf32>
    %123 = arith.mulf %122, %109 : vector<8x128xf32>
    %124 = math.sin %123 : vector<8x128xf32>
    %125 = vector.broadcast %113 : vector<8x1xf32> to vector<8x128xf32>
    %126 = arith.mulf %125, %124 : vector<8x128xf32>
    %127 = arith.mulf %126, %124 : vector<8x128xf32>
    %128 = arith.addf %109, %127 : vector<8x128xf32>
    %c0_106 = arith.constant 0 : index
    %c128_107 = arith.constant 128 : index
    %129 = vector.load %arg6[%c0_106, %c128_107] : memref<8x384xf32, #tpu.memory_space<vmem>>, vector<8x128xf32>
    tpu.vector_store %arg6[%c0_106, %c128_107], %128 {strides = array<i32>} : memref<8x384xf32, #tpu.memory_space<vmem>>, vector<8x128xf32>,
    %c0_108 = arith.constant 0 : index
    %c101 = arith.constant 101 : index
    %130 = vector.load %arg6[%c0_108, %c101] : memref<8x384xf32, #tpu.memory_space<vmem>>, vector<8x128xf32>
    %c0_109 = arith.constant 0 : index
    %c0_110 = arith.constant 0 : index
    %131 = vector.load %arg7[%c0_109, %c0_110] : memref<56x128xf32, #tpu.memory_space<vmem>>, vector<8x128xf32>
    tpu.vector_store %arg7[%c0_109, %c0_110], %130 {strides = array<i32>} : memref<56x128xf32, #tpu.memory_space<vmem>>, vector<8x128xf32>,
    %c0_111 = arith.constant 0 : index
    %c110 = arith.constant 110 : index
    %132 = vector.load %arg6[%c0_111, %c110] : memref<8x384xf32, #tpu.memory_space<vmem>>, vector<8x128xf32>
    %c8_112 = arith.constant 8 : index
    %c0_113 = arith.constant 0 : index
    %133 = vector.load %arg7[%c8_112, %c0_113] : memref<56x128xf32, #tpu.memory_space<vmem>>, vector<8x128xf32>
    tpu.vector_store %arg7[%c8_112, %c0_113], %132 {strides = array<i32>} : memref<56x128xf32, #tpu.memory_space<vmem>>, vector<8x128xf32>,
    %c0_114 = arith.constant 0 : index
    %c119_115 = arith.constant 119 : index
    %134 = vector.load %arg6[%c0_114, %c119_115] : memref<8x384xf32, #tpu.memory_space<vmem>>, vector<8x128xf32>
    %c16_116 = arith.constant 16 : index
    %c0_117 = arith.constant 0 : index
    %135 = vector.load %arg7[%c16_116, %c0_117] : memref<56x128xf32, #tpu.memory_space<vmem>>, vector<8x128xf32>
    tpu.vector_store %arg7[%c16_116, %c0_117], %134 {strides = array<i32>} : memref<56x128xf32, #tpu.memory_space<vmem>>, vector<8x128xf32>,
    %c0_118 = arith.constant 0 : index
    %c128_119 = arith.constant 128 : index
    %136 = vector.load %arg6[%c0_118, %c128_119] : memref<8x384xf32, #tpu.memory_space<vmem>>, vector<8x128xf32>
    %c24_120 = arith.constant 24 : index
    %c0_121 = arith.constant 0 : index
    %137 = vector.load %arg7[%c24_120, %c0_121] : memref<56x128xf32, #tpu.memory_space<vmem>>, vector<8x128xf32>
    tpu.vector_store %arg7[%c24_120, %c0_121], %136 {strides = array<i32>} : memref<56x128xf32, #tpu.memory_space<vmem>>, vector<8x128xf32>,
    %c0_122 = arith.constant 0 : index
    %c137_123 = arith.constant 137 : index
    %138 = vector.load %arg6[%c0_122, %c137_123] : memref<8x384xf32, #tpu.memory_space<vmem>>, vector<8x128xf32>
    %c32_124 = arith.constant 32 : index
    %c0_125 = arith.constant 0 : index
    %139 = vector.load %arg7[%c32_124, %c0_125] : memref<56x128xf32, #tpu.memory_space<vmem>>, vector<8x128xf32>
    tpu.vector_store %arg7[%c32_124, %c0_125], %138 {strides = array<i32>} : memref<56x128xf32, #tpu.memory_space<vmem>>, vector<8x128xf32>,
    %c0_126 = arith.constant 0 : index
    %c146 = arith.constant 146 : index
    %140 = vector.load %arg6[%c0_126, %c146] : memref<8x384xf32, #tpu.memory_space<vmem>>, vector<8x128xf32>
    %c40_127 = arith.constant 40 : index
    %c0_128 = arith.constant 0 : index
    %141 = vector.load %arg7[%c40_127, %c0_128] : memref<56x128xf32, #tpu.memory_space<vmem>>, vector<8x128xf32>
    tpu.vector_store %arg7[%c40_127, %c0_128], %140 {strides = array<i32>} : memref<56x128xf32, #tpu.memory_space<vmem>>, vector<8x128xf32>,
    %c0_129 = arith.constant 0 : index
    %c155 = arith.constant 155 : index
    %142 = vector.load %arg6[%c0_129, %c155] : memref<8x384xf32, #tpu.memory_space<vmem>>, vector<8x128xf32>
    %c48_130 = arith.constant 48 : index
    %c0_131 = arith.constant 0 : index
    %143 = vector.load %arg7[%c48_130, %c0_131] : memref<56x128xf32, #tpu.memory_space<vmem>>, vector<8x128xf32>
    tpu.vector_store %arg7[%c48_130, %c0_131], %142 {strides = array<i32>} : memref<56x128xf32, #tpu.memory_space<vmem>>, vector<8x128xf32>,
    %c2_132 = arith.constant 2 : index
    %c0_133 = arith.constant 0 : index
    %c0_134 = arith.constant 0 : index
    %144 = vector.load %arg3[%c2_132, %c0_133, %c0_134] : memref<3x8x56xf32, #tpu.memory_space<vmem>>, vector<1x8x56xf32>
    %145 = vector.shape_cast %144 : vector<1x8x56xf32> to vector<8x56xf32>
    %c0_135 = arith.constant 0 : index
    %c0_136 = arith.constant 0 : index
    %146 = vector.load %arg7[%c0_135, %c0_136] : memref<56x128xf32, #tpu.memory_space<vmem>>, vector<56x128xf32>
    %cst_137 = arith.constant dense<0.000000e+00> : vector<8x128xf32>
    %147 = tpu.matmul %145, %146, %cst_137 {dimension_numbers = #tpu.dot_dimension_numbers<[1], [0], [0], [1], [0, 0, 1, 1], [], []>} : vector<8x56xf32>, vector<56x128xf32>, vector<8x128xf32> -> vector<8x128xf32>
    %148 = vector.broadcast %115 : vector<8x1xf32> to vector<8x128xf32>
    %149 = arith.addf %147, %148 : vector<8x128xf32>
    %150 = vector.broadcast %117 : vector<8x1xf32> to vector<8x128xf32>
    %151 = arith.mulf %150, %149 : vector<8x128xf32>
    %152 = math.sin %151 : vector<8x128xf32>
    %153 = vector.broadcast %119 : vector<8x1xf32> to vector<8x128xf32>
    %154 = arith.mulf %153, %152 : vector<8x128xf32>
    %155 = arith.mulf %154, %152 : vector<8x128xf32>
    %156 = arith.addf %149, %155 : vector<8x128xf32>
    %c2_138 = arith.constant 2 : index
    %c0_139 = arith.constant 0 : index
    %c0_140 = arith.constant 0 : index
    %157 = vector.load %arg4[%c2_138, %c0_139, %c0_140] : memref<3x8x8xf32, #tpu.memory_space<vmem>>, vector<1x8x8xf32>
    %158 = vector.shape_cast %157 : vector<1x8x8xf32> to vector<8x8xf32>
    %cst_141 = arith.constant dense<0.000000e+00> : vector<8x128xf32>
    %159 = tpu.matmul %158, %156, %cst_141 {dimension_numbers = #tpu.dot_dimension_numbers<[1], [0], [0], [1], [0, 0, 1, 1], [], []>} : vector<8x8xf32>, vector<8x128xf32>, vector<8x128xf32> -> vector<8x128xf32>
    %160 = vector.broadcast %121 : vector<8x1xf32> to vector<8x128xf32>
    %161 = arith.addf %159, %160 : vector<8x128xf32>
    %162 = arith.addf %109, %161 : vector<8x128xf32>
    %c0_142 = arith.constant 0 : index
    %c0_143 = arith.constant 0 : index
    %c0_144 = arith.constant 0 : index
    %163 = vector.load %arg5[%c0_142, %c0_143, %c0_144] : memref<1x8x128xf32, #tpu.memory_space<vmem>>, vector<1x8x128xf32>
    %164 = vector.shape_cast %163 : vector<1x8x128xf32> to vector<8x128xf32>
    %165 = vector.shape_cast %162 : vector<8x128xf32> to vector<1x8x128xf32>
    tpu.vector_store %arg5[%c0_142, %c0_143, %c0_144], %165 {strides = array<i32>} : memref<1x8x128xf32, #tpu.memory_space<vmem>>, vector<1x8x128xf32>,
    return
  }
  func.func @transform_0(%arg0: i32) -> (i32, i32, i32) {
    %c0_i32 = arith.constant 0 : i32
    %c0_i32_0 = arith.constant 0 : i32
    %c0_i32_1 = arith.constant 0 : i32
    return %arg0, %c0_i32, %c0_i32_0 : i32, i32, i32
  }
  func.func @transform_1(%arg0: i32) -> (i32, i32, i32) {
    %c0_i32 = arith.constant 0 : i32
    %c0_i32_0 = arith.constant 0 : i32
    %c0_i32_1 = arith.constant 0 : i32
    %c0_i32_2 = arith.constant 0 : i32
    return %c0_i32, %c0_i32_0, %c0_i32_1 : i32, i32, i32
  }
  func.func @transform_2(%arg0: i32) -> (i32, i32, i32) {
    %c0_i32 = arith.constant 0 : i32
    %c0_i32_0 = arith.constant 0 : i32
    %c0_i32_1 = arith.constant 0 : i32
    %c0_i32_2 = arith.constant 0 : i32
    return %c0_i32, %c0_i32_0, %c0_i32_1 : i32, i32, i32
  }
  func.func @transform_3(%arg0: i32) -> (i32, i32, i32) {
    %c0_i32 = arith.constant 0 : i32
    %c0_i32_0 = arith.constant 0 : i32
    %c0_i32_1 = arith.constant 0 : i32
    %c0_i32_2 = arith.constant 0 : i32
    return %c0_i32, %c0_i32_0, %c0_i32_1 : i32, i32, i32
  }
  func.func @transform_4(%arg0: i32) -> (i32, i32, i32) {
    %c0_i32 = arith.constant 0 : i32
    %c0_i32_0 = arith.constant 0 : i32
    %c0_i32_1 = arith.constant 0 : i32
    return %arg0, %c0_i32, %c0_i32_0 : i32, i32, i32
  }
}

module attributes {stable_mosaic.version = 11 : i64} {
  func.func @_snake_down_conv_kernel(%arg0: i32, %arg1: memref<1x16x65xf32, #tpu.memory_space<vmem>>, %arg2: memref<2x16x1xf32, #tpu.memory_space<vmem>>, %arg3: memref<16x32xf32, #tpu.memory_space<vmem>>, %arg4: memref<16x1xf32, #tpu.memory_space<vmem>>, %arg5: memref<1x16x64xf32, #tpu.memory_space<vmem>>) attributes {dimension_semantics = [#tpu.dimension_semantics<parallel>], iteration_bounds = array<i64: 2>, scalar_prefetch = 0 : i64, scratch_operands = 0 : i64, tpu.core_type = #tpu.core_type<tc>, window_params = [{transform_indices = @transform_0, window_bounds = array<i64: 1, 16, 65>}, {pipeline_mode = #tpu.pipeline_mode<synchronous>, transform_indices = @transform_1, window_bounds = array<i64: 2, 16, 1>}, {pipeline_mode = #tpu.pipeline_mode<synchronous>, transform_indices = @transform_2, window_bounds = array<i64: 16, 32>}, {pipeline_mode = #tpu.pipeline_mode<synchronous>, transform_indices = @transform_3, window_bounds = array<i64: 16, 1>}, {transform_indices = @transform_4, window_bounds = array<i64: 1, 16, 64>}]} {
    %c0 = arith.constant 0 : index
    %c0_0 = arith.constant 0 : index
    %c0_1 = arith.constant 0 : index
    %0 = vector.load %arg1[%c0, %c0_0, %c0_1] : memref<1x16x65xf32, #tpu.memory_space<vmem>>, vector<1x16x65xf32>
    %1 = vector.shape_cast %0 : vector<1x16x65xf32> to vector<16x65xf32>
    %c0_2 = arith.constant 0 : index
    %c0_3 = arith.constant 0 : index
    %c0_4 = arith.constant 0 : index
    %2 = vector.load %arg2[%c0_2, %c0_3, %c0_4] : memref<2x16x1xf32, #tpu.memory_space<vmem>>, vector<1x16x1xf32>
    %3 = vector.shape_cast %2 : vector<1x16x1xf32> to vector<16x1xf32>
    %c1 = arith.constant 1 : index
    %c0_5 = arith.constant 0 : index
    %c0_6 = arith.constant 0 : index
    %4 = vector.load %arg2[%c1, %c0_5, %c0_6] : memref<2x16x1xf32, #tpu.memory_space<vmem>>, vector<1x16x1xf32>
    %5 = vector.shape_cast %4 : vector<1x16x1xf32> to vector<16x1xf32>
    %6 = vector.broadcast %3 : vector<16x1xf32> to vector<16x65xf32>
    %7 = arith.mulf %6, %1 : vector<16x65xf32>
    %8 = math.sin %7 : vector<16x65xf32>
    %9 = vector.broadcast %5 : vector<16x1xf32> to vector<16x65xf32>
    %10 = arith.mulf %9, %8 : vector<16x65xf32>
    %11 = arith.mulf %10, %8 : vector<16x65xf32>
    %12 = arith.addf %1, %11 : vector<16x65xf32>
    %13 = vector.extract_strided_slice %12 {offsets = [0, 0], sizes = [16, 64], strides = [1, 1]} : vector<16x65xf32> to vector<16x64xf32>
    %14 = vector.extract_strided_slice %12 {offsets = [0, 1], sizes = [16, 64], strides = [1, 1]} : vector<16x65xf32> to vector<16x64xf32>
    %15 = tpu.concatenate %13, %14 in 0 : vector<16x64xf32>, vector<16x64xf32> -> vector<32x64xf32>
    %c0_7 = arith.constant 0 : index
    %c0_8 = arith.constant 0 : index
    %16 = vector.load %arg3[%c0_7, %c0_8] : memref<16x32xf32, #tpu.memory_space<vmem>>, vector<16x32xf32>
    %cst = arith.constant dense<0.000000e+00> : vector<16x64xf32>
    %17 = tpu.matmul %16, %15, %cst {dimension_numbers = #tpu.dot_dimension_numbers<[1], [0], [0], [1], [0, 0, 1, 1], [], []>} : vector<16x32xf32>, vector<32x64xf32>, vector<16x64xf32> -> vector<16x64xf32>
    %c0_9 = arith.constant 0 : index
    %c0_10 = arith.constant 0 : index
    %18 = vector.load %arg4[%c0_9, %c0_10] : memref<16x1xf32, #tpu.memory_space<vmem>>, vector<16x1xf32>
    %19 = vector.broadcast %18 : vector<16x1xf32> to vector<16x64xf32>
    %20 = arith.addf %17, %19 : vector<16x64xf32>
    %c0_11 = arith.constant 0 : index
    %c0_12 = arith.constant 0 : index
    %c0_13 = arith.constant 0 : index
    %21 = vector.load %arg5[%c0_11, %c0_12, %c0_13] : memref<1x16x64xf32, #tpu.memory_space<vmem>>, vector<1x16x64xf32>
    %22 = vector.shape_cast %21 : vector<1x16x64xf32> to vector<16x64xf32>
    %23 = vector.shape_cast %20 : vector<16x64xf32> to vector<1x16x64xf32>
    tpu.vector_store %arg5[%c0_11, %c0_12, %c0_13], %23 {strides = array<i32>} : memref<1x16x64xf32, #tpu.memory_space<vmem>>, vector<1x16x64xf32>,
    return
  }
  func.func @transform_0(%arg0: i32) -> (i32, i32, i32) {
    %c0_i32 = arith.constant 0 : i32
    %c0_i32_0 = arith.constant 0 : i32
    %c0_i32_1 = arith.constant 0 : i32
    return %arg0, %c0_i32, %c0_i32_0 : i32, i32, i32
  }
  func.func @transform_1(%arg0: i32) -> (i32, i32, i32) {
    %c0_i32 = arith.constant 0 : i32
    %c0_i32_0 = arith.constant 0 : i32
    %c0_i32_1 = arith.constant 0 : i32
    %c0_i32_2 = arith.constant 0 : i32
    return %c0_i32, %c0_i32_0, %c0_i32_1 : i32, i32, i32
  }
  func.func @transform_2(%arg0: i32) -> (i32, i32) {
    %c0_i32 = arith.constant 0 : i32
    %c0_i32_0 = arith.constant 0 : i32
    %c0_i32_1 = arith.constant 0 : i32
    return %c0_i32, %c0_i32_0 : i32, i32
  }
  func.func @transform_3(%arg0: i32) -> (i32, i32) {
    %c0_i32 = arith.constant 0 : i32
    %c0_i32_0 = arith.constant 0 : i32
    %c0_i32_1 = arith.constant 0 : i32
    return %c0_i32, %c0_i32_0 : i32, i32
  }
  func.func @transform_4(%arg0: i32) -> (i32, i32, i32) {
    %c0_i32 = arith.constant 0 : i32
    %c0_i32_0 = arith.constant 0 : i32
    %c0_i32_1 = arith.constant 0 : i32
    return %arg0, %c0_i32, %c0_i32_0 : i32, i32, i32
  }
}

</mosaic_0001>

<llo_original>
// kernel: encoder_block_forward.3
$region0: #{encoder_block_forward.3}
  #allocation0 [shape = 'u32[]', space=smem, size = 0x4, offset = 0x4, fixed_abs, tag = 'smem constant byte address 0x4 - core index']
  #allocation1 [shape = 'u32[144,128]{1,0:T(1,128)}', space=vmem, size = 0x12000, scoped, tag = 'internal scratch']
  %s0 = inlined_call_operand.vmem [shape: f32[2,16,65], index: 0, kind: input, shape index: {}]
  %s1 = inlined_call_operand.vmem [shape: f32[2,16,1], index: 1, kind: input, shape index: {}]
  %s2 = inlined_call_operand.vmem [shape: f32[16,32], index: 2, kind: input, shape index: {}]
  %s3 = inlined_call_operand.vmem [shape: f32[16,1], index: 3, kind: input, shape index: {}]
  %s4 = inlined_call_operand.hbm [shape: f32[2,16,64], index: 4, kind: output, shape index: {}]
  %s5 = sld [smem:[#allocation0]]
  $region49: #{encoder_block_forward.3} parent=0
    _
  %s7 = ssub.s32 1, %s5
  %s8 = scalar_select 0, %s7, %s5
  $region1: #{encoder_block_forward.3} parent=0
    #allocation2 [shape = 'u8[16384]{0}', space=vmem, size = 0x4000, scoped, tag = 'output window, operand 0']
    #allocation3 [shape = 's32[2]{0}', space=sflag, size = 0x8, scoped, tag = 'scoped memory for encoder_block_forward.3']
    %9 = vsyncpa [#allocation3], 0
    %s10 = scalar_lea.sflag [#allocation3], 1
    %11 = vsyncpa %s10, 0
    loop: start=0, step=1, limit=4
    $region2: #{encoder_block_forward.3} parent=1 // loop_pre_header
      _
    $region3: #{encoder_block_forward.3} parent=1 // loop_header
      %s13 = sphi 0, %s17
      %p14 = scmp.ge.s32.totalorder %s13, 4
      %s23 = sphi 0, %s25
      %s26 = sphi 0, %s23
      %s27 = sphi 0, %s26
      %s43 = sphi 0, %s27
      %s47 = sphi 0, %s47
      %s49 = sphi 0, %s47
      %s50 = sphi 0, %s49
      %s64 = sphi 0, %s50
      %s68 = sphi 0, %s68
      %s70 = sphi 0, %s68
      %s71 = sphi 0, %s70
      %s85 = sphi 0, %s71
      %s89 = sphi 0, %s89
      %s91 = sphi 0, %s89
      %s92 = sphi 0, %s91
      %s106 = sphi 0, %s92
      %s112 = sphi 0, %s114
      %s115 = sphi 0, %s112
      %s116 = sphi 0, %s115
      %s132 = sphi 0, %s116
    $region4: #{encoder_block_forward.3} parent=1 // loop_header_branch
      %16 = sbr.rel (%p14) target = $region8
    $region5: #{encoder_block_forward.3} parent=1 // loop_body
      %s18 = ssub.s32 %s13, 1
      %s19 = ssub.s32 %s13, 2
      %s20 = sadd.s32 %s13, 1
      %s21 = ssub.s32 %s13, %s20
      %p22 = scmp.eq.s32.totalorder %s21, 0
      %s24 = sadd.s32 %s23, 1
      %s25 = scalar_select %p22, %s23, %s24
      %p28 = pneg %p22
      %p29 = scmp.eq.s32.totalorder %s13, 1
      %p30 = por %p28, %p29
      %p31 = scmp.ne.s32.totalorder %s23, %s26
      %p32 = scmp.eq.s32.totalorder %s13, 0
      %p33 = por %p31, %p32
      %p34 = scmp.ne.s32.totalorder %s23, %s26
      %p35 = scmp.eq.s32.totalorder %s18, 1
      %p36 = por %p34, %p35
      %p37 = scmp.ne.s32.totalorder %s26, %s27
      %p38 = scmp.eq.s32.totalorder %s18, 0
      %p39 = por %p37, %p38
      %p40 = scmp.ne.s32.totalorder %s26, %s27
      %p41 = scmp.eq.s32.totalorder %s19, 1
      %p42 = por %p40, %p41
      %p44 = scmp.ne.s32.totalorder %s27, %s43
      %p45 = scmp.eq.s32.totalorder %s19, 0
      %p46 = por %p44, %p45
      %s48 = sadd.s32 %s47, 1
      %p51 = scmp.eq.s32.totalorder %s13, 1
      %p52 = scmp.ne.s32.totalorder %s47, %s49
      %p53 = scmp.eq.s32.totalorder %s13, 0
      %p54 = por %p52, %p53
      %p55 = scmp.ne.s32.totalorder %s47, %s49
      %p56 = scmp.eq.s32.totalorder %s18, 1
      %p57 = por %p55, %p56
      %p58 = scmp.ne.s32.totalorder %s49, %s50
      %p59 = scmp.eq.s32.totalorder %s18, 0
      %p60 = por %p58, %p59
      %p61 = scmp.ne.s32.totalorder %s49, %s50
      %p62 = scmp.eq.s32.totalorder %s19, 1
      %p63 = por %p61, %p62
      %p65 = scmp.ne.s32.totalorder %s50, %s64
      %p66 = scmp.eq.s32.totalorder %s19, 0
      %p67 = por %p65, %p66
      %s69 = sadd.s32 %s68, 1
      %p72 = scmp.eq.s32.totalorder %s13, 1
      %p73 = scmp.ne.s32.totalorder %s68, %s70
      %p74 = scmp.eq.s32.totalorder %s13, 0
      %p75 = por %p73, %p74
      %p76 = scmp.ne.s32.totalorder %s68, %s70
      %p77 = scmp.eq.s32.totalorder %s18, 1
      %p78 = por %p76, %p77
      %p79 = scmp.ne.s32.totalorder %s70, %s71
      %p80 = scmp.eq.s32.totalorder %s18, 0
      %p81 = por %p79, %p80
      %p82 = scmp.ne.s32.totalorder %s70, %s71
      %p83 = scmp.eq.s32.totalorder %s19, 1
      %p84 = por %p82, %p83
      %p86 = scmp.ne.s32.totalorder %s71, %s85
      %p87 = scmp.eq.s32.totalorder %s19, 0
      %p88 = por %p86, %p87
      %s90 = sadd.s32 %s89, 1
      %p93 = scmp.eq.s32.totalorder %s13, 1
      %p94 = scmp.ne.s32.totalorder %s89, %s91
      %p95 = scmp.eq.s32.totalorder %s13, 0
      %p96 = por %p94, %p95
      %p97 = scmp.ne.s32.totalorder %s89, %s91
      %p98 = scmp.eq.s32.totalorder %s18, 1
      %p99 = por %p97, %p98
      %p100 = scmp.ne.s32.totalorder %s91, %s92
      %p101 = scmp.eq.s32.totalorder %s18, 0
      %p102 = por %p100, %p101
      %p103 = scmp.ne.s32.totalorder %s91, %s92
      %p104 = scmp.eq.s32.totalorder %s19, 1
      %p105 = por %p103, %p104
      %p107 = scmp.ne.s32.totalorder %s92, %s106
      %p108 = scmp.eq.s32.totalorder %s19, 0
      %p109 = por %p107, %p108
      %s110 = ssub.s32 %s13, %s20
      %p111 = scmp.eq.s32.totalorder %s110, 0
      %s113 = sadd.s32 %s112, 1
      %s114 = scalar_select %p111, %s112, %s113
      %p117 = pneg %p111
      %p118 = scmp.eq.s32.totalorder %s13, 1
      %p119 = por %p117, %p118
      %p120 = scmp.ne.s32.totalorder %s112, %s115
      %p121 = scmp.eq.s32.totalorder %s13, 0
      %p122 = por %p120, %p121
      %p123 = scmp.ne.s32.totalorder %s112, %s115
      %p124 = scmp.eq.s32.totalorder %s18, 1
      %p125 = por %p123, %p124
      %p126 = scmp.ne.s32.totalorder %s115, %s116
      %p127 = scmp.eq.s32.totalorder %s18, 0
      %p128 = por %p126, %p127
      %p129 = scmp.ne.s32.totalorder %s115, %s116
      %p130 = scmp.eq.s32.totalorder %s19, 1
      %p131 = por %p129, %p130
      %p133 = scmp.ne.s32.totalorder %s116, %s132
      %p134 = scmp.eq.s32.totalorder %s19, 0
      %p135 = por %p133, %p134
      %p136 = scmp.le.s32.totalorder 1, %s13
      %p137 = scmp.lt.s32.totalorder %s13, 3
      %p138 = pnand %p136, %p137
      %p139 = pneg %p138
      // Predicated region
      $region9: #{encoder_block_forward.3} parent=5 // pred_check
        _
      $region10: #{encoder_block_forward.3} parent=5 // pred_check_branch
        %141 = sbr.rel (%p138) target = $region12
      $region11: #{encoder_block_forward.3} parent=5 // pred_region
        %s142 = ssub.s32 %s13, 1
        // Predicated region
        $region13: #{encoder_block_forward.3} parent=11 // pred_check
          %p143 = pneg %p60
        $region14: #{encoder_block_forward.3} parent=11 // pred_check_branch
          %145 = sbr.rel (%p143) target = $region16
        $region15: #{encoder_block_forward.3} parent=11 // pred_region
          _
        $region16: #{encoder_block_forward.3} parent=11 // pred_fallthru
          _
        // Predicated region
        $region17: #{encoder_block_forward.3} parent=11 // pred_check
          %p146 = pneg %p81
        $region18: #{encoder_block_forward.3} parent=11 // pred_check_branch
          %148 = sbr.rel (%p146) target = $region20
        $region19: #{encoder_block_forward.3} parent=11 // pred_region
          _
        $region20: #{encoder_block_forward.3} parent=11 // pred_fallthru
          _
        // Predicated region
        $region21: #{encoder_block_forward.3} parent=11 // pred_check
          %p149 = pneg %p102
        $region22: #{encoder_block_forward.3} parent=11 // pred_check_branch
          %151 = sbr.rel (%p149) target = $region24
        $region23: #{encoder_block_forward.3} parent=11 // pred_region
          _
        $region24: #{encoder_block_forward.3} parent=11 // pred_fallthru
          _
      $region12: #{encoder_block_forward.3} parent=5 // pred_fallthru
        _
      %p152 = scmp.lt.s32.totalorder %s13, 2
      // Predicated region
      $region25: #{encoder_block_forward.3} parent=5 // pred_check
        %p153 = pneg %p152
      $region26: #{encoder_block_forward.3} parent=5 // pred_check_branch
        %155 = sbr.rel (%p153) target = $region28
      $region27: #{encoder_block_forward.3} parent=5 // pred_region
        // Predicated region
        $region29: #{encoder_block_forward.3} parent=27 // pred_check
          %p156 = pneg %p33
        $region30: #{encoder_block_forward.3} parent=27 // pred_check_branch
          %158 = sbr.rel (%p156) target = $region32
        $region31: #{encoder_block_forward.3} parent=27 // pred_region
          %p159 = scmp.lt.s32.totalorder %s13, 1
          %s160 = scalar_select %p159, %s13, 1
          %s161 = smul.addr %s160, 2
          %s162 = smul.addr %s161, 8
          %s163 = scalar_lea.vmem %s0, %s162
        $region32: #{encoder_block_forward.3} parent=27 // pred_fallthru
          _
      $region28: #{encoder_block_forward.3} parent=5 // pred_fallthru
        _
      %p164 = scmp.le.s32.totalorder 1, %s13
      %p165 = scmp.lt.s32.totalorder %s13, 3
      %p166 = pnand %p164, %p165
      %p167 = pneg %p166
      // Predicated region
      $region33: #{encoder_block_forward.3} parent=5 // pred_check
        _
      $region34: #{encoder_block_forward.3} parent=5 // pred_check_branch
        %169 = sbr.rel (%p166) target = $region36
      $region35: #{encoder_block_forward.3} parent=5 // pred_region
        %s170 = ssub.s32 %s13, 1
        %p171 = scmp.lt.s32.totalorder %s18, 1
        %s172 = scalar_select %p171, %s18, 1
        %s173 = smul.addr %s172, 2
        %s174 = smul.addr %s173, 8
        %s175 = scalar_lea.vmem %s0, %s174
        %p176 = pneg %p39
        %p177 = pneg %p36
        %p178 = pneg %p60
        %p179 = pneg %p57
        %p180 = pneg %p81
        %p181 = pneg %p78
        %p182 = pneg %p102
        %p183 = pneg %p99
        %p184 = pneg %p128
        %p185 = pneg %p125
        %s186 = sand.u32 %s115, 1
        %s187 = scalar_lea.sflag [#allocation3], %s186
        %s188 = sand.u32 %s115, 1
        %s189 = smul.addr %s188, 16
        %s190 = scalar_lea.vmem [#allocation2], %s189
        %p191 = scmp.lt.s32.totalorder %s18, 1
        %s192 = scalar_select %p191, %s18, 1
        %s193 = smul.addr %s192, 2
        %s194 = smul.addr %s193, 8
        %s195 = scalar_lea.vmem %s0, %s194
        %v196 = vld [vmem:[%s195] sm:$0xff]
        %v197 = vld [vmem:[%s195 + $0x8] sm:$0xff]
        %v198 = vld [vmem:[%s1] sm:$0xff]
        %v199 = vld [vmem:[%s1 + $0x8] sm:$0xff]
        %s200 = scalar_lea.vmem %s1, 16
        %v201 = vld [vmem:[%s200] sm:$0xff]
        %v202 = vld [vmem:[%s200 + $0x8] sm:$0xff]
        %204 = vset.pattern.permute.xlu0 0
        %205 = vperm.xlu0 %204, %v198
        %v206 = vpop.permute.xlu0 %205
        %209 = vset.pattern.permute.xlu0 0
        %210 = vperm.xlu0 %209, %v199
        %v211 = vpop.permute.xlu0 %210
        %v213 = vmul.f32 %v206, %v196
        %v214 = vmul.f32 %v211, %v197
        %v215 = vand.u32 2147483647, %v213
        %vm216 = vcmp.le.f32.partialorder %v215, 0.7853982
        %vm217 = vcmp.lt.s32.totalorder %v213, 0
        %v218 = vand.u32 %v213, 2139095040
        %v219 = vshrl.u32 %v218, 23
        %v220 = vsub.s32 %v219, 127
        %v221 = vand.u32 2147483647, %v213
        %v222 = vand.u32 %v221, 8388607
        %v223 = vor.u32 %v222, 8388608
        %v224 = vsub.s32 0, %v223
        %v225 = vadd.s32 %v220, 1
        %vm226 = vcmp.gt.s32.totalorder %v225, 0
        %v227 = vsel %vm226, %v225, 0
        %v228 = vshrl.u32 %v227, 5
        %v229 = vand.u32 %v227, 31
        %v230 = vsub.s32 32, %v229
        %v231 = vshrl.u32 683565275, %v230
        %v232 = vshll.u32 683565275, %v229
        %v233 = vshrl.u32 2475754826, %v230
        %v234 = vor.u32 %v232, %v233
        %v235 = vshll.u32 2475754826, %v229
        %v236 = vshrl.u32 2131351028, %v230
        %v237 = vor.u32 %v235, %v236
        %v238 = vshll.u32 2131351028, %v229
        %v239 = vshrl.u32 2102212464, %v230
        %v240 = vor.u32 %v238, %v239
        %v241 = vshll.u32 2102212464, %v229
        %v242 = vshrl.u32 920167782, %v230
        %v243 = vor.u32 %v241, %v242
        %v244 = vshll.u32 920167782, %v229
        %v245 = vshrl.u32 1326507024, %v230
        %v246 = vor.u32 %v244, %v245
        %vm247 = vcmp.lt.s32.totalorder %v228, 1
        %vm248 = vcmp.lt.s32.totalorder %v228, 2
        %vm249 = vcmp.lt.s32.totalorder %v228, 3
        %vm250 = vcmp.lt.s32.totalorder %v228, 4
        %v251 = vsel %vm247, %v231, %v234
        %v252 = vsel %vm250, %v240, 2102212464
        %v253 = vsel %vm249, %v237, %v252
        %v254 = vsel %vm248, %v251, %v253
        %v255 = vsel %vm247, %v234, %v237
        %v256 = vsel %vm250, %v243, 920167782
        %v257 = vsel %vm249, %v240, %v256
        %v258 = vsel %vm248, %v255, %v257
        %v259 = vsel %vm247, %v237, %v240
        %v260 = vsel %vm250, %v246, 1326507024
        %v261 = vsel %vm249, %v243, %v260
        %v262 = vsel %vm248, %v259, %v261
        %v263 = vshll.u32 %v223, 8
        %v264 = vmul.u32.u64.compose %v263, %v262
        %v265 = vextract.low.u32 %v264
        %v266 = vextract.high.u32 %v264
        %v267 = vmul.u32.u64.compose %v263, %v258
        %v268 = vextract.low.u32 %v267
        %v269 = vextract.high.u32 %v267
        %v270 = vmul.u32 %v263, %v254
        %v271 = vadd.s32 %v266, %v268
        %vm272 = vc.u32 %v266, %v268
        %v273 = vadd.s32 %v269, 1
        %v274 = vsel %vm272, %v273, %v269
        %v275 = vadd.s32 %v270, %v274
        %v276 = vadd.s32 %v275, 536870912
        %v277 = vshrl.u32 %v276, 30
        %v278 = vshll.u32 %v277, 30
        %v279 = vsub.s32 %v275, %v278
        %vm280 = vcmp.lt.s32.totalorder %v279, 0
        %v281 = vsub.s32 0, %v279
        %v282 = vsel %vm280, %v281, %v279
        %v283 = vclz %v282
        %v284 = vsub.s32 %v283, 2
        %vm285 = vcmp.gt.s32.totalorder 0, %v284
        %v286 = vsel %vm285, 0, %v284
        %v287 = vsub.s32 32, %v286
        %v288 = vshll.u32 %v279, %v286
        %v289 = vshrl.u32 %v271, %v287
        %v290 = vor.u32 %v288, %v289
        %v291 = vsub.s32 4294967266, %v286
        %v292 = vadd.s32 %v291, 127
        %v293 = vshll.u32 %v292, 23
        %v294 = vor.u32 4788187, %v293
        %v295 = vand.u32 2147483647, %v294
        %v297 = vcvt.s32.f32 %v290
        %v298 = vmul.f32 %v297, %v295
        %v299 = vxor.u32 %v298, 2147483648
        %v300 = vsel %vm217, %v299, %v298
        %v301 = vsub.s32 4, %v277
        %v302 = vsel %vm217, %v301, %v277
        %v303 = vsel %vm216, %v213, %v300
        %v304 = vsel %vm216, 0, %v302
        %v305 = vcosq.f32.pop %v303
        %v306 = vsinq.f32.pop %v303
        %vm307 = vweird.f32 %v213
        %v308 = vadd.s32 %v304, 3
        %v309 = vand.u32 %v308, 3
        %vm310 = vcmp.lt.s32.totalorder %v309, 2
        %vm311 = vcmp.eq.s32.totalorder %v309, 0
        %v312 = vxor.u32 %v306, 2147483648
        %v313 = vsel %vm311, %v305, %v312
        %vm314 = vcmp.eq.s32.totalorder %v309, 2
        %v315 = vxor.u32 %v305, 2147483648
        %v316 = vsel %vm314, %v315, %v306
        %v317 = vsel %vm310, %v313, %v316
        %v318 = vsel %vm307, nan, %v317
        %v319 = vand.u32 2147483647, %v214
        %vm320 = vcmp.le.f32.partialorder %v319, 0.7853982
        %vm321 = vcmp.lt.s32.totalorder %v214, 0
        %v322 = vand.u32 %v214, 2139095040
        %v323 = vshrl.u32 %v322, 23
        %v324 = vsub.s32 %v323, 127
        %v325 = vand.u32 2147483647, %v214
        %v326 = vand.u32 %v325, 8388607
        %v327 = vor.u32 %v326, 8388608
        %v328 = vsub.s32 0, %v327
        %v329 = vadd.s32 %v324, 1
        %vm330 = vcmp.gt.s32.totalorder %v329, 0
        %v331 = vsel %vm330, %v329, 0
        %v332 = vshrl.u32 %v331, 5
        %v333 = vand.u32 %v331, 31
        %v334 = vsub.s32 32, %v333
        %v335 = vshrl.u32 683565275, %v334
        %v336 = vshll.u32 683565275, %v333
        %v337 = vshrl.u32 2475754826, %v334
        %v338 = vor.u32 %v336, %v337
        %v339 = vshll.u32 2475754826, %v333
        %v340 = vshrl.u32 2131351028, %v334
        %v341 = vor.u32 %v339, %v340
        %v342 = vshll.u32 2131351028, %v333
        %v343 = vshrl.u32 2102212464, %v334
        %v344 = vor.u32 %v342, %v343
        %v345 = vshll.u32 2102212464, %v333
        %v346 = vshrl.u32 920167782, %v334
        %v347 = vor.u32 %v345, %v346
        %v348 = vshll.u32 920167782, %v333
        %v349 = vshrl.u32 1326507024, %v334
        %v350 = vor.u32 %v348, %v349
        %vm351 = vcmp.lt.s32.totalorder %v332, 1
        %vm352 = vcmp.lt.s32.totalorder %v332, 2
        %vm353 = vcmp.lt.s32.totalorder %v332, 3
        %vm354 = vcmp.lt.s32.totalorder %v332, 4
        %v355 = vsel %vm351, %v335, %v338
        %v356 = vsel %vm354, %v344, 2102212464
        %v357 = vsel %vm353, %v341, %v356
        %v358 = vsel %vm352, %v355, %v357
        %v359 = vsel %vm351, %v338, %v341
        %v360 = vsel %vm354, %v347, 920167782
        %v361 = vsel %vm353, %v344, %v360
        %v362 = vsel %vm352, %v359, %v361
        %v363 = vsel %vm351, %v341, %v344
        %v364 = vsel %vm354, %v350, 1326507024
        %v365 = vsel %vm353, %v347, %v364
        %v366 = vsel %vm352, %v363, %v365
        %v367 = vshll.u32 %v327, 8
        %v368 = vmul.u32.u64.compose %v367, %v366
        %v369 = vextract.low.u32 %v368
        %v370 = vextract.high.u32 %v368
        %v371 = vmul.u32.u64.compose %v367, %v362
        %v372 = vextract.low.u32 %v371
        %v373 = vextract.high.u32 %v371
        %v374 = vmul.u32 %v367, %v358
        %v375 = vadd.s32 %v370, %v372
        %vm376 = vc.u32 %v370, %v372
        %v377 = vadd.s32 %v373, 1
        %v378 = vsel %vm376, %v377, %v373
        %v379 = vadd.s32 %v374, %v378
        %v380 = vadd.s32 %v379, 536870912
        %v381 = vshrl.u32 %v380, 30
        %v382 = vshll.u32 %v381, 30
        %v383 = vsub.s32 %v379, %v382
        %vm384 = vcmp.lt.s32.totalorder %v383, 0
        %v385 = vsub.s32 0, %v383
        %v386 = vsel %vm384, %v385, %v383
        %v387 = vclz %v386
        %v388 = vsub.s32 %v387, 2
        %vm389 = vcmp.gt.s32.totalorder 0, %v388
        %v390 = vsel %vm389, 0, %v388
        %v391 = vsub.s32 32, %v390
        %v392 = vshll.u32 %v383, %v390
        %v393 = vshrl.u32 %v375, %v391
        %v394 = vor.u32 %v392, %v393
        %v395 = vsub.s32 4294967266, %v390
        %v396 = vadd.s32 %v395, 127
        %v397 = vshll.u32 %v396, 23
        %v398 = vor.u32 4788187, %v397
        %v399 = vand.u32 2147483647, %v398
        %v401 = vcvt.s32.f32 %v394
        %v402 = vmul.f32 %v401, %v399
        %v403 = vxor.u32 %v402, 2147483648
        %v404 = vsel %vm321, %v403, %v402
        %v405 = vsub.s32 4, %v381
        %v406 = vsel %vm321, %v405, %v381
        %v407 = vsel %vm320, %v214, %v404
        %v408 = vsel %vm320, 0, %v406
        %v409 = vcosq.f32.pop %v407
        %v410 = vsinq.f32.pop %v407
        %vm411 = vweird.f32 %v214
        %v412 = vadd.s32 %v408, 3
        %v413 = vand.u32 %v412, 3
        %vm414 = vcmp.lt.s32.totalorder %v413, 2
        %vm415 = vcmp.eq.s32.totalorder %v413, 0
        %v416 = vxor.u32 %v410, 2147483648
        %v417 = vsel %vm415, %v409, %v416
        %vm418 = vcmp.eq.s32.totalorder %v413, 2
        %v419 = vxor.u32 %v409, 2147483648
        %v420 = vsel %vm418, %v419, %v410
        %v421 = vsel %vm414, %v417, %v420
        %v422 = vsel %vm411, nan, %v421
        %424 = vset.pattern.permute.xlu0 0
        %425 = vperm.xlu0 %424, %v201
        %v426 = vpop.permute.xlu0 %425
        %429 = vset.pattern.permute.xlu0 0
        %430 = vperm.xlu0 %429, %v202
        %v431 = vpop.permute.xlu0 %430
        %v433 = vmul.f32 %v426, %v318
        %v434 = vmul.f32 %v431, %v422
        %v435 = vmul.f32 %v433, %v318
        %v436 = vmul.f32 %v434, %v422
        %v437 = vadd.f32 %v196, %v435
        %v438 = vadd.f32 %v197, %v436
        %441 = vrot.lane.b32.xlu0 %v437, 127
        %v442 = vpop.permute.xlu0 %441
        %443 = vrot.lane.b32.xlu0 %v438, 127
        %v444 = vpop.permute.xlu0 %443
        %v447 = vld [vmem:[%s2] sm:$0xff]
        %v448 = vld [vmem:[%s2 + $0x8] sm:$0xff]
        %v449 = vld [vmem:[%s3] sm:$0xff]
        %v450 = vld [vmem:[%s3 + $0x8] sm:$0xff]
        %452 = vset.pattern.permute.xlu0 0
        %453 = vperm.xlu0 %452, %v449
        %v454 = vpop.permute.xlu0 %453
        %457 = vset.pattern.permute.xlu0 0
        %458 = vperm.xlu0 %457, %v450
        %v459 = vpop.permute.xlu0 %458
        %vm461 = vcmask 261120
        %v463 = vsel %vm461, %v447, 0
        %v466 = vsel %vm461, %v448, 0
        %468 = vmatprep.subr.mxu0 0.0
        %469 = vmatpush1.msra.mxu0 %v437
        %470 = vmatprep.subr.mxu0 0.0
        %471 = vmatpush1.msra.mxu0 %v438
        %472 = vmatprep.subr.mxu0 0.0
        %473 = vmatpush1.msra.mxu0 %v442
        %474 = vmatprep.subr.mxu0 0.0
        %475 = vmatpush1.msra.mxu0 %v444
        %476 = vmatprep.subr.mxu0 0.0
        %477 = vmatpush1.msra.mxu0 0.0
        %478 = vmatprep.subr.mxu0 0.0
        %479 = vmatpush1.msra.mxu0 0.0
        %480 = vmatprep.subr.mxu0 0.0
        %481 = vmatpush1.msra.mxu0 0.0
        %482 = vmatprep.subr.mxu0 0.0
        %483 = vmatpush1.msra.mxu0 0.0
        %484 = vmatprep.subr.mxu0 0.0
        %485 = vmatpush1.msra.mxu0 0.0
        %486 = vmatprep.subr.mxu0 0.0
        %487 = vmatpush1.msra.mxu0 0.0
        %488 = vmatprep.subr.mxu0 0.0
        %489 = vmatpush1.msra.mxu0 0.0
        %490 = vmatprep.subr.mxu0 0.0
        %491 = vmatpush1.msra.mxu0 0.0
        %492 = vmatprep.subr.mxu0 0.0
        %493 = vmatpush1.msra.mxu0 0.0
        %494 = vmatprep.subr.mxu0 0.0
        %495 = vmatpush1.msra.mxu0 0.0
        %496 = vmatprep.subr.mxu0 0.0
        %497 = vmatpush1.msra.mxu0 0.0
        %498 = vmatprep.subr.mxu0 0.0
        %499 = vmatpush1.msra.mxu0 0.0
        %500 = vmatprep.subr.mxu0 0.0
        %501 = vmatpush1.msra.mxu0 0.0
        %502 = vmatprep.subr.mxu0 0.0
        %503 = vmatpush1.msra.mxu0 0.0
        %504 = vmatprep.subr.mxu0 0.0
        %505 = vmatpush1.msra.mxu0 0.0
        %506 = vmatprep.subr.mxu0 0.0
        %507 = vmatpush1.msra.mxu0 0.0
        %508 = vmatprep.subr.mxu0 0.0
        %509 = vmatpush1.msra.mxu0 0.0
        %510 = vmatprep.subr.mxu0 0.0
        %511 = vmatpush1.msra.mxu0 0.0
        %512 = vmatprep.subr.mxu0 0.0
        %513 = vmatpush1.msra.mxu0 0.0
        %514 = vmatprep.subr.mxu0 0.0
        %515 = vmatpush1.msra.mxu0 0.0
        %516 = vmatprep.subr.mxu0 0.0
        %517 = vmatpush1.msra.mxu0 0.0
        %518 = vmatprep.subr.mxu0 0.0
        %519 = vmatpush1.msra.mxu0 0.0
        %520 = vmatprep.subr.mxu0 0.0
        %521 = vmatpush1.msra.mxu0 0.0
        %522 = vmatprep.subr.mxu0 0.0
        %523 = vmatpush1.msra.mxu0 0.0
        %524 = vmatprep.subr.mxu0 0.0
        %525 = vmatpush1.msra.mxu0 0.0
        %526 = vmatprep.subr.mxu0 0.0
        %527 = vmatpush1.msra.mxu0 0.0
        %528 = vmatprep.subr.mxu0 0.0
        %529 = vmatpush1.msra.mxu0 0.0
        %530 = vmatprep.subr.mxu0 0.0
        %531 = vmatpush1.msra.mxu0 0.0
        %532 = vmatprep.mubr.f32.mxu0 0.0
        %533 = vmatmul.mubr.f32.gmra.mrb[0].mxu0 %v463
        %v534 = vpop.f32.mrb[0].mxu0
        %v535 = vadd.f32 %v454, %v534
        %v536 = vpop.f32.mrb[0].mxu0
        %537 = vmatprep.mubr.f32.mxu0 0.0
        %538 = vmatmul.mubr.f32.gmra.mrb[0].mxu0 %v466
        %v539 = vpop.f32.mrb[0].mxu0
        %v540 = vadd.f32 %v459, %v539
        %v541 = vpop.f32.mrb[0].mxu0
        %542 = vdwg.mxu0
        %vm543 = vcmask 523264
        %544 = vst.msk [vmem:[%s190] sm:$0xff] %vm543, %v535
        %545 = vst.msk [vmem:[%s190 + $0x8] sm:$0xff] %vm543, %v540
        %s546 = sand.u32 %s115, 1
        %s547 = scalar_lea.sflag [#allocation3], %s546
        %s548 = sand.u32 %s115, 1
        %s549 = smul.addr %s548, 16
        %s550 = scalar_lea.vmem [#allocation2], %s549
        // Predicated region
        $region37: #{encoder_block_forward.3} parent=35 // pred_check
          %p551 = pneg %p125
        $region38: #{encoder_block_forward.3} parent=35 // pred_check_branch
          %553 = sbr.rel (%p551) target = $region40
        $region39: #{encoder_block_forward.3} parent=35 // pred_region
          %s555 = ssub.s32 256, 256
          %556 = vsyncadd %s547, %s555
          %s557 = smul.addr %s18, 2
          %s558 = smul.addr %s557, 128
          %s559 = scalar_lea.hbm %s4, %s558
          %s560 = sshll.u32 %s550, 4
          %s561 = int_to_ptr.vmem [resolvable:$true] %s560
          %566 = dma.vmem_to_hbm [thread:$0]  %s561, 256, %s559, %s547, 128, 128, 8
        $region40: #{encoder_block_forward.3} parent=35 // pred_fallthru
          _
      $region36: #{encoder_block_forward.3} parent=5 // pred_fallthru
        _
      %p567 = scmp.le.s32.totalorder 2, %s13
      // Predicated region
      $region41: #{encoder_block_forward.3} parent=5 // pred_check
        %p568 = pneg %p567
      $region42: #{encoder_block_forward.3} parent=5 // pred_check_branch
        %570 = sbr.rel (%p568) target = $region44
      $region43: #{encoder_block_forward.3} parent=5 // pred_region
        %s571 = ssub.s32 %s13, 2
        // Predicated region
        $region45: #{encoder_block_forward.3} parent=43 // pred_check
          %p572 = pneg %p131
        $region46: #{encoder_block_forward.3} parent=43 // pred_check_branch
          %574 = sbr.rel (%p572) target = $region48
        $region47: #{encoder_block_forward.3} parent=43 // pred_region
          %s575 = sand.u32 %s116, 1
          %s576 = scalar_lea.sflag [#allocation3], %s575
          %s577 = sand.u32 %s116, 1
          %s578 = smul.addr %s577, 16
          %s579 = scalar_lea.vmem [#allocation2], %s578
          %580 = dma.done %s576, 256
        $region48: #{encoder_block_forward.3} parent=43 // pred_fallthru
          _
      $region44: #{encoder_block_forward.3} parent=5 // pred_fallthru
        _
    $region6: #{encoder_block_forward.3} parent=1 // loop_footer
      %s17 = sadd.s32 1, %s13
    $region7: #{encoder_block_forward.3} parent=1 // loop_footer_branch
      %12 = sbr.rel target = $region3
    $region8: #{encoder_block_forward.3} parent=1 // loop_exit
      _
    %581 = vsyncpa [#allocation3], 1
    %s582 = scalar_lea.sflag [#allocation3], 1
    %583 = vsyncpa %s582, 1

// kernel: encoder_block_forward.2
$region0: #{encoder_block_forward.2}
  #allocation0 [shape = 'u32[]', space=smem, size = 0x4, offset = 0x4, fixed_abs, tag = 'smem constant byte address 0x4 - core index']
  #allocation1 [shape = 'u32[144,128]{1,0:T(1,128)}', space=vmem, size = 0x12000, scoped, tag = 'internal scratch']
  #allocation2 [shape = 'f32[8,384]{1,0:T(8,128)}', space=vmem, size = 0x3000, scoped, tag = 'scratch operand']
  #allocation3 [shape = 'f32[56,128]{1,0:T(8,128)}', space=vmem, size = 0x7000, scoped, tag = 'scratch operand']
  %s0 = inlined_call_operand.vmem [shape: f32[2,8,128], index: 0, kind: input, shape index: {}]
  %s1 = inlined_call_operand.vmem [shape: f32[18,8,1], index: 1, kind: input, shape index: {}]
  %s2 = inlined_call_operand.vmem [shape: f32[3,8,56], index: 2, kind: input, shape index: {}]
  %s3 = inlined_call_operand.vmem [shape: f32[3,8,8], index: 3, kind: input, shape index: {}]
  %s4 = inlined_call_operand.vmem [shape: f32[2,8,128], index: 4, kind: output, shape index: {}]
  %s5 = sld [smem:[#allocation0]]
  $region49: #{encoder_block_forward.2} parent=0
    _
  %s7 = ssub.s32 1, %s5
  %s8 = scalar_select 0, %s7, %s5
  loop: start=0, step=1, limit=4
  $region2: #{encoder_block_forward.2} parent=0 // loop_pre_header
    _
  $region3: #{encoder_block_forward.2} parent=0 // loop_header
    %s10 = sphi 0, %s14
    %p11 = scmp.ge.s32.totalorder %s10, 4
    %s20 = sphi 0, %s22
    %s23 = sphi 0, %s20
    %s24 = sphi 0, %s23
    %s40 = sphi 0, %s24
    %s44 = sphi 0, %s44
    %s46 = sphi 0, %s44
    %s47 = sphi 0, %s46
    %s61 = sphi 0, %s47
    %s65 = sphi 0, %s65
    %s67 = sphi 0, %s65
    %s68 = sphi 0, %s67
    %s82 = sphi 0, %s68
    %s86 = sphi 0, %s86
    %s88 = sphi 0, %s86
    %s89 = sphi 0, %s88
    %s103 = sphi 0, %s89
    %s109 = sphi 0, %s111
    %s112 = sphi 0, %s109
    %s113 = sphi 0, %s112
    %s129 = sphi 0, %s113
  $region4: #{encoder_block_forward.2} parent=0 // loop_header_branch
    %13 = sbr.rel (%p11) target = $region8
  $region5: #{encoder_block_forward.2} parent=0 // loop_body
    %s15 = ssub.s32 %s10, 1
    %s16 = ssub.s32 %s10, 2
    %s17 = sadd.s32 %s10, 1
    %s18 = ssub.s32 %s10, %s17
    %p19 = scmp.eq.s32.totalorder %s18, 0
    %s21 = sadd.s32 %s20, 1
    %s22 = scalar_select %p19, %s20, %s21
    %p25 = pneg %p19
    %p26 = scmp.eq.s32.totalorder %s10, 1
    %p27 = por %p25, %p26
    %p28 = scmp.ne.s32.totalorder %s20, %s23
    %p29 = scmp.eq.s32.totalorder %s10, 0
    %p30 = por %p28, %p29
    %p31 = scmp.ne.s32.totalorder %s20, %s23
    %p32 = scmp.eq.s32.totalorder %s15, 1
    %p33 = por %p31, %p32
    %p34 = scmp.ne.s32.totalorder %s23, %s24
    %p35 = scmp.eq.s32.totalorder %s15, 0
    %p36 = por %p34, %p35
    %p37 = scmp.ne.s32.totalorder %s23, %s24
    %p38 = scmp.eq.s32.totalorder %s16, 1
    %p39 = por %p37, %p38
    %p41 = scmp.ne.s32.totalorder %s24, %s40
    %p42 = scmp.eq.s32.totalorder %s16, 0
    %p43 = por %p41, %p42
    %s45 = sadd.s32 %s44, 1
    %p48 = scmp.eq.s32.totalorder %s10, 1
    %p49 = scmp.ne.s32.totalorder %s44, %s46
    %p50 = scmp.eq.s32.totalorder %s10, 0
    %p51 = por %p49, %p50
    %p52 = scmp.ne.s32.totalorder %s44, %s46
    %p53 = scmp.eq.s32.totalorder %s15, 1
    %p54 = por %p52, %p53
    %p55 = scmp.ne.s32.totalorder %s46, %s47
    %p56 = scmp.eq.s32.totalorder %s15, 0
    %p57 = por %p55, %p56
    %p58 = scmp.ne.s32.totalorder %s46, %s47
    %p59 = scmp.eq.s32.totalorder %s16, 1
    %p60 = por %p58, %p59
    %p62 = scmp.ne.s32.totalorder %s47, %s61
    %p63 = scmp.eq.s32.totalorder %s16, 0
    %p64 = por %p62, %p63
    %s66 = sadd.s32 %s65, 1
    %p69 = scmp.eq.s32.totalorder %s10, 1
    %p70 = scmp.ne.s32.totalorder %s65, %s67
    %p71 = scmp.eq.s32.totalorder %s10, 0
    %p72 = por %p70, %p71
    %p73 = scmp.ne.s32.totalorder %s65, %s67
    %p74 = scmp.eq.s32.totalorder %s15, 1
    %p75 = por %p73, %p74
    %p76 = scmp.ne.s32.totalorder %s67, %s68
    %p77 = scmp.eq.s32.totalorder %s15, 0
    %p78 = por %p76, %p77
    %p79 = scmp.ne.s32.totalorder %s67, %s68
    %p80 = scmp.eq.s32.totalorder %s16, 1
    %p81 = por %p79, %p80
    %p83 = scmp.ne.s32.totalorder %s68, %s82
    %p84 = scmp.eq.s32.totalorder %s16, 0
    %p85 = por %p83, %p84
    %s87 = sadd.s32 %s86, 1
    %p90 = scmp.eq.s32.totalorder %s10, 1
    %p91 = scmp.ne.s32.totalorder %s86, %s88
    %p92 = scmp.eq.s32.totalorder %s10, 0
    %p93 = por %p91, %p92
    %p94 = scmp.ne.s32.totalorder %s86, %s88
    %p95 = scmp.eq.s32.totalorder %s15, 1
    %p96 = por %p94, %p95
    %p97 = scmp.ne.s32.totalorder %s88, %s89
    %p98 = scmp.eq.s32.totalorder %s15, 0
    %p99 = por %p97, %p98
    %p100 = scmp.ne.s32.totalorder %s88, %s89
    %p101 = scmp.eq.s32.totalorder %s16, 1
    %p102 = por %p100, %p101
    %p104 = scmp.ne.s32.totalorder %s89, %s103
    %p105 = scmp.eq.s32.totalorder %s16, 0
    %p106 = por %p104, %p105
    %s107 = ssub.s32 %s10, %s17
    %p108 = scmp.eq.s32.totalorder %s107, 0
    %s110 = sadd.s32 %s109, 1
    %s111 = scalar_select %p108, %s109, %s110
    %p114 = pneg %p108
    %p115 = scmp.eq.s32.totalorder %s10, 1
    %p116 = por %p114, %p115
    %p117 = scmp.ne.s32.totalorder %s109, %s112
    %p118 = scmp.eq.s32.totalorder %s10, 0
    %p119 = por %p117, %p118
    %p120 = scmp.ne.s32.totalorder %s109, %s112
    %p121 = scmp.eq.s32.totalorder %s15, 1
    %p122 = por %p120, %p121
    %p123 = scmp.ne.s32.totalorder %s112, %s113
    %p124 = scmp.eq.s32.totalorder %s15, 0
    %p125 = por %p123, %p124
    %p126 = scmp.ne.s32.totalorder %s112, %s113
    %p127 = scmp.eq.s32.totalorder %s16, 1
    %p128 = por %p126, %p127
    %p130 = scmp.ne.s32.totalorder %s113, %s129
    %p131 = scmp.eq.s32.totalorder %s16, 0
    %p132 = por %p130, %p131
    %p133 = scmp.le.s32.totalorder 1, %s10
    %p134 = scmp.lt.s32.totalorder %s10, 3
    %p135 = pnand %p133, %p134
    %p136 = pneg %p135
    // Predicated region
    $region9: #{encoder_block_forward.2} parent=5 // pred_check
      _
    $region10: #{encoder_block_forward.2} parent=5 // pred_check_branch
      %138 = sbr.rel (%p135) target = $region12
    $region11: #{encoder_block_forward.2} parent=5 // pred_region
      %s139 = ssub.s32 %s10, 1
      // Predicated region
      $region13: #{encoder_block_forward.2} parent=11 // pred_check
        %p140 = pneg %p57
      $region14: #{encoder_block_forward.2} parent=11 // pred_check_branch
        %142 = sbr.rel (%p140) target = $region16
      $region15: #{encoder_block_forward.2} parent=11 // pred_region
        _
      $region16: #{encoder_block_forward.2} parent=11 // pred_fallthru
        _
      // Predicated region
      $region17: #{encoder_block_forward.2} parent=11 // pred_check
        %p143 = pneg %p78
      $region18: #{encoder_block_forward.2} parent=11 // pred_check_branch
        %145 = sbr.rel (%p143) target = $region20
      $region19: #{encoder_block_forward.2} parent=11 // pred_region
        _
      $region20: #{encoder_block_forward.2} parent=11 // pred_fallthru
        _
      // Predicated region
      $region21: #{encoder_block_forward.2} parent=11 // pred_check
        %p146 = pneg %p99
      $region22: #{encoder_block_forward.2} parent=11 // pred_check_branch
        %148 = sbr.rel (%p146) target = $region24
      $region23: #{encoder_block_forward.2} parent=11 // pred_region
        _
      $region24: #{encoder_block_forward.2} parent=11 // pred_fallthru
        _
    $region12: #{encoder_block_forward.2} parent=5 // pred_fallthru
      _
    %p149 = scmp.lt.s32.totalorder %s10, 2
    // Predicated region
    $region25: #{encoder_block_forward.2} parent=5 // pred_check
      %p150 = pneg %p149
    $region26: #{encoder_block_forward.2} parent=5 // pred_check_branch
      %152 = sbr.rel (%p150) target = $region28
    $region27: #{encoder_block_forward.2} parent=5 // pred_region
      // Predicated region
      $region29: #{encoder_block_forward.2} parent=27 // pred_check
        %p153 = pneg %p30
      $region30: #{encoder_block_forward.2} parent=27 // pred_check_branch
        %155 = sbr.rel (%p153) target = $region32
      $region31: #{encoder_block_forward.2} parent=27 // pred_region
        %p156 = scmp.lt.s32.totalorder %s10, 1
        %s157 = scalar_select %p156, %s10, 1
        %s158 = smul.addr %s157, 8
        %s159 = scalar_lea.vmem %s0, %s158
      $region32: #{encoder_block_forward.2} parent=27 // pred_fallthru
        _
    $region28: #{encoder_block_forward.2} parent=5 // pred_fallthru
      _
    %p160 = scmp.le.s32.totalorder 1, %s10
    %p161 = scmp.lt.s32.totalorder %s10, 3
    %p162 = pnand %p160, %p161
    %p163 = pneg %p162
    // Predicated region
    $region33: #{encoder_block_forward.2} parent=5 // pred_check
      _
    $region34: #{encoder_block_forward.2} parent=5 // pred_check_branch
      %165 = sbr.rel (%p162) target = $region36
    $region35: #{encoder_block_forward.2} parent=5 // pred_region
      %s166 = ssub.s32 %s10, 1
      %p167 = scmp.lt.s32.totalorder %s15, 1
      %s168 = scalar_select %p167, %s15, 1
      %s169 = smul.addr %s168, 8
      %s170 = scalar_lea.vmem %s0, %s169
      %p171 = pneg %p36
      %p172 = pneg %p33
      %p173 = pneg %p57
      %p174 = pneg %p54
      %p175 = pneg %p78
      %p176 = pneg %p75
      %p177 = pneg %p99
      %p178 = pneg %p96
      %p179 = pneg %p125
      %p180 = pneg %p122
      %p181 = scmp.lt.s32.totalorder %s15, 1
      %s182 = scalar_select %p181, %s15, 1
      %s183 = smul.addr %s182, 8
      %s184 = scalar_lea.vmem %s4, %s183
      %p185 = scmp.lt.s32.totalorder %s15, 1
      %s186 = scalar_select %p185, %s15, 1
      %s187 = smul.addr %s186, 8
      %s188 = scalar_lea.vmem %s0, %s187
      %p189 = scmp.lt.s32.totalorder %s15, 1
      %s190 = scalar_select %p189, %s15, 1
      %s191 = smul.addr %s190, 8
      %s192 = scalar_lea.vmem %s4, %s191
      %193 = vst [vmem:[#allocation2] sm:$0xff] 0.0
      %194 = vst [vmem:[#allocation2 + $0x8] sm:$0xff] 0.0
      %195 = vst [vmem:[#allocation2 + $0x10] sm:$0xff] 0.0
      %v196 = vld [vmem:[%s188] sm:$0xff]
      %v197 = vld [vmem:[%s1] sm:$0xff]
      %s198 = scalar_lea.vmem %s1, 8
      %v199 = vld [vmem:[%s198] sm:$0xff]
      %s200 = scalar_lea.vmem %s1, 16
      %v201 = vld [vmem:[%s200] sm:$0xff]
      %s202 = scalar_lea.vmem %s1, 24
      %v203 = vld [vmem:[%s202] sm:$0xff]
      %s204 = scalar_lea.vmem %s1, 32
      %v205 = vld [vmem:[%s204] sm:$0xff]
      %s206 = scalar_lea.vmem %s1, 40
      %v207 = vld [vmem:[%s206] sm:$0xff]
      %209 = vset.pattern.permute.xlu0 0
      %210 = vperm.xlu0 %209, %v197
      %v211 = vpop.permute.xlu0 %210
      %v213 = vmul.f32 %v211, %v196
      %v214 = vand.u32 2147483647, %v213
      %vm215 = vcmp.le.f32.partialorder %v214, 0.7853982
      %vm216 = vcmp.lt.s32.totalorder %v213, 0
      %v217 = vand.u32 %v213, 2139095040
      %v218 = vshrl.u32 %v217, 23
      %v219 = vsub.s32 %v218, 127
      %v220 = vand.u32 2147483647, %v213
      %v221 = vand.u32 %v220, 8388607
      %v222 = vor.u32 %v221, 8388608
      %v223 = vsub.s32 0, %v222
      %v224 = vadd.s32 %v219, 1
      %vm225 = vcmp.gt.s32.totalorder %v224, 0
      %v226 = vsel %vm225, %v224, 0
      %v227 = vshrl.u32 %v226, 5
      %v228 = vand.u32 %v226, 31
      %v229 = vsub.s32 32, %v228
      %v230 = vshrl.u32 683565275, %v229
      %v231 = vshll.u32 683565275, %v228
      %v232 = vshrl.u32 2475754826, %v229
      %v233 = vor.u32 %v231, %v232
      %v234 = vshll.u32 2475754826, %v228
      %v235 = vshrl.u32 2131351028, %v229
      %v236 = vor.u32 %v234, %v235
      %v237 = vshll.u32 2131351028, %v228
      %v238 = vshrl.u32 2102212464, %v229
      %v239 = vor.u32 %v237, %v238
      %v240 = vshll.u32 2102212464, %v228
      %v241 = vshrl.u32 920167782, %v229
      %v242 = vor.u32 %v240, %v241
      %v243 = vshll.u32 920167782, %v228
      %v244 = vshrl.u32 1326507024, %v229
      %v245 = vor.u32 %v243, %v244
      %vm246 = vcmp.lt.s32.totalorder %v227, 1
      %vm247 = vcmp.lt.s32.totalorder %v227, 2
      %vm248 = vcmp.lt.s32.totalorder %v227, 3
      %vm249 = vcmp.lt.s32.totalorder %v227, 4
      %v250 = vsel %vm246, %v230, %v233
      %v251 = vsel %vm249, %v239, 2102212464
      %v252 = vsel %vm248, %v236, %v251
      %v253 = vsel %vm247, %v250, %v252
      %v254 = vsel %vm246, %v233, %v236
      %v255 = vsel %vm249, %v242, 920167782
      %v256 = vsel %vm248, %v239, %v255
      %v257 = vsel %vm247, %v254, %v256
      %v258 = vsel %vm246, %v236, %v239
      %v259 = vsel %vm249, %v245, 1326507024
      %v260 = vsel %vm248, %v242, %v259
      %v261 = vsel %vm247, %v258, %v260
      %v262 = vshll.u32 %v222, 8
      %v263 = vmul.u32.u64.compose %v262, %v261
      %v264 = vextract.low.u32 %v263
      %v265 = vextract.high.u32 %v263
      %v266 = vmul.u32.u64.compose %v262, %v257
      %v267 = vextract.low.u32 %v266
      %v268 = vextract.high.u32 %v266
      %v269 = vmul.u32 %v262, %v253
      %v270 = vadd.s32 %v265, %v267
      %vm271 = vc.u32 %v265, %v267
      %v272 = vadd.s32 %v268, 1
      %v273 = vsel %vm271, %v272, %v268
      %v274 = vadd.s32 %v269, %v273
      %v275 = vadd.s32 %v274, 536870912
      %v276 = vshrl.u32 %v275, 30
      %v277 = vshll.u32 %v276, 30
      %v278 = vsub.s32 %v274, %v277
      %vm279 = vcmp.lt.s32.totalorder %v278, 0
      %v280 = vsub.s32 0, %v278
      %v281 = vsel %vm279, %v280, %v278
      %v282 = vclz %v281
      %v283 = vsub.s32 %v282, 2
      %vm284 = vcmp.gt.s32.totalorder 0, %v283
      %v285 = vsel %vm284, 0, %v283
      %v286 = vsub.s32 32, %v285
      %v287 = vshll.u32 %v278, %v285
      %v288 = vshrl.u32 %v270, %v286
      %v289 = vor.u32 %v287, %v288
      %v290 = vsub.s32 4294967266, %v285
      %v291 = vadd.s32 %v290, 127
      %v292 = vshll.u32 %v291, 23
      %v293 = vor.u32 4788187, %v292
      %v294 = vand.u32 2147483647, %v293
      %v296 = vcvt.s32.f32 %v289
      %v297 = vmul.f32 %v296, %v294
      %v298 = vxor.u32 %v297, 2147483648
      %v299 = vsel %vm216, %v298, %v297
      %v300 = vsub.s32 4, %v276
      %v301 = vsel %vm216, %v300, %v276
      %v302 = vsel %vm215, %v213, %v299
      %v303 = vsel %vm215, 0, %v301
      %v304 = vcosq.f32.pop %v302
      %v305 = vsinq.f32.pop %v302
      %vm306 = vweird.f32 %v213
      %v307 = vadd.s32 %v303, 3
      %v308 = vand.u32 %v307, 3
      %vm309 = vcmp.lt.s32.totalorder %v308, 2
      %vm310 = vcmp.eq.s32.totalorder %v308, 0
      %v311 = vxor.u32 %v305, 2147483648
      %v312 = vsel %vm310, %v304, %v311
      %vm313 = vcmp.eq.s32.totalorder %v308, 2
      %v314 = vxor.u32 %v304, 2147483648
      %v315 = vsel %vm313, %v314, %v305
      %v316 = vsel %vm309, %v312, %v315
      %v317 = vsel %vm306, nan, %v316
      %319 = vset.pattern.permute.xlu0 0
      %320 = vperm.xlu0 %319, %v199
      %v321 = vpop.permute.xlu0 %320
      %v323 = vmul.f32 %v321, %v317
      %v324 = vmul.f32 %v323, %v317
      %v325 = vadd.f32 %v196, %v324
      %326 = vst [vmem:[#allocation2 + $0x8] sm:$0xff] %v325
      %v327 = vld [vmem:[#allocation2] sm:$0xff]
      %v328 = vld [vmem:[#allocation2 + $0x8] sm:$0xff]
      %331 = vrot.lane.b32.xlu0 %v327, 3
      %v332 = vpop.permute.xlu0 %331
      %333 = vrot.lane.b32.xlu0 %v328, 3
      %v334 = vpop.permute.xlu0 %333
      %vm335 = vcmask 23552
      %v336 = vsel %vm335, %v332, %v334
      %338 = vst [vmem:[#allocation3] sm:$0xff] %v336
      %v339 = vld [vmem:[#allocation2] sm:$0xff]
      %v340 = vld [vmem:[#allocation2 + $0x8] sm:$0xff]
      %343 = vrot.lane.b32.xlu0 %v339, 2
      %v344 = vpop.permute.xlu0 %343
      %345 = vrot.lane.b32.xlu0 %v340, 2
      %v346 = vpop.permute.xlu0 %345
      %vm347 = vcmask 15360
      %v348 = vsel %vm347, %v344, %v346
      %350 = vst [vmem:[#allocation3 + $0x8] sm:$0xff] %v348
      %v351 = vld [vmem:[#allocation2] sm:$0xff]
      %v352 = vld [vmem:[#allocation2 + $0x8] sm:$0xff]
      %355 = vrot.lane.b32.xlu0 %v351, 1
      %v356 = vpop.permute.xlu0 %355
      %357 = vrot.lane.b32.xlu0 %v352, 1
      %v358 = vpop.permute.xlu0 %357
      %vm359 = vcmask 7168
      %v360 = vsel %vm359, %v356, %v358
      %362 = vst [vmem:[#allocation3 + $0x10] sm:$0xff] %v360
      %v363 = vld [vmem:[#allocation2 + $0x8] sm:$0xff]
      %364 = vst [vmem:[#allocation3 + $0x18] sm:$0xff] %v363
      %v365 = vld [vmem:[#allocation2 + $0x8] sm:$0xff]
      %v366 = vld [vmem:[#allocation2 + $0x10] sm:$0xff]
      %369 = vrot.lane.b32.xlu0 %v365, 127
      %v370 = vpop.permute.xlu0 %369
      %371 = vrot.lane.b32.xlu0 %v366, 127
      %v372 = vpop.permute.xlu0 %371
      %vm373 = vcmask 1039360
      %v374 = vsel %vm373, %v370, %v372
      %376 = vst [vmem:[#allocation3 + $0x20] sm:$0xff] %v374
      %v377 = vld [vmem:[#allocation2 + $0x8] sm:$0xff]
      %v378 = vld [vmem:[#allocation2 + $0x10] sm:$0xff]
      %381 = vrot.lane.b32.xlu0 %v377, 126
      %v382 = vpop.permute.xlu0 %381
      %383 = vrot.lane.b32.xlu0 %v378, 126
      %v384 = vpop.permute.xlu0 %383
      %vm385 = vcmask 1031168
      %v386 = vsel %vm385, %v382, %v384
      %388 = vst [vmem:[#allocation3 + $0x28] sm:$0xff] %v386
      %v389 = vld [vmem:[#allocation2 + $0x8] sm:$0xff]
      %v390 = vld [vmem:[#allocation2 + $0x10] sm:$0xff]
      %393 = vrot.lane.b32.xlu0 %v389, 125
      %v394 = vpop.permute.xlu0 %393
      %395 = vrot.lane.b32.xlu0 %v390, 125
      %v396 = vpop.permute.xlu0 %395
      %vm397 = vcmask 1022976
      %v398 = vsel %vm397, %v394, %v396
      %400 = vst [vmem:[#allocation3 + $0x30] sm:$0xff] %v398
      %v401 = vld [vmem:[%s2] sm:$0xff]
      %v402 = vld [vmem:[#allocation3] sm:$0xff]
      %v403 = vld [vmem:[#allocation3 + $0x8] sm:$0xff]
      %v404 = vld [vmem:[#allocation3 + $0x10] sm:$0xff]
      %v405 = vld [vmem:[#allocation3 + $0x18] sm:$0xff]
      %v406 = vld [vmem:[#allocation3 + $0x20] sm:$0xff]
      %v407 = vld [vmem:[#allocation3 + $0x28] sm:$0xff]
      %v408 = vld [vmem:[#allocation3 + $0x30] sm:$0xff]
      %410 = vset.pattern.permute.xlu0 0
      %411 = vperm.xlu0 %410, %v201
      %v412 = vpop.permute.xlu0 %411
      %vm414 = vcmask 457728
      %v416 = vsel %vm414, %v401, 0
      %418 = vmatprep.subr.mxu0 0.0
      %419 = vmatpush1.msra.mxu0 %v402
      %420 = vmatprep.subr.mxu0 0.0
      %421 = vmatpush1.msra.mxu0 %v403
      %422 = vmatprep.subr.mxu0 0.0
      %423 = vmatpush1.msra.mxu0 %v404
      %424 = vmatprep.subr.mxu0 0.0
      %425 = vmatpush1.msra.mxu0 %v405
      %426 = vmatprep.subr.mxu0 0.0
      %427 = vmatpush1.msra.mxu0 %v406
      %428 = vmatprep.subr.mxu0 0.0
      %429 = vmatpush1.msra.mxu0 %v407
      %430 = vmatprep.subr.mxu0 0.0
      %431 = vmatpush1.msra.mxu0 %v408
      %432 = vmatprep.subr.mxu0 0.0
      %433 = vmatpush1.msra.mxu0 0.0
      %434 = vmatprep.subr.mxu0 0.0
      %435 = vmatpush1.msra.mxu0 0.0
      %436 = vmatprep.subr.mxu0 0.0
      %437 = vmatpush1.msra.mxu0 0.0
      %438 = vmatprep.subr.mxu0 0.0
      %439 = vmatpush1.msra.mxu0 0.0
      %440 = vmatprep.subr.mxu0 0.0
      %441 = vmatpush1.msra.mxu0 0.0
      %442 = vmatprep.subr.mxu0 0.0
      %443 = vmatpush1.msra.mxu0 0.0
      %444 = vmatprep.subr.mxu0 0.0
      %445 = vmatpush1.msra.mxu0 0.0
      %446 = vmatprep.subr.mxu0 0.0
      %447 = vmatpush1.msra.mxu0 0.0
      %448 = vmatprep.subr.mxu0 0.0
      %449 = vmatpush1.msra.mxu0 0.0
      %450 = vmatprep.subr.mxu0 0.0
      %451 = vmatpush1.msra.mxu0 0.0
      %452 = vmatprep.subr.mxu0 0.0
      %453 = vmatpush1.msra.mxu0 0.0
      %454 = vmatprep.subr.mxu0 0.0
      %455 = vmatpush1.msra.mxu0 0.0
      %456 = vmatprep.subr.mxu0 0.0
      %457 = vmatpush1.msra.mxu0 0.0
      %458 = vmatprep.subr.mxu0 0.0
      %459 = vmatpush1.msra.mxu0 0.0
      %460 = vmatprep.subr.mxu0 0.0
      %461 = vmatpush1.msra.mxu0 0.0
      %462 = vmatprep.subr.mxu0 0.0
      %463 = vmatpush1.msra.mxu0 0.0
      %464 = vmatprep.subr.mxu0 0.0
      %465 = vmatpush1.msra.mxu0 0.0
      %466 = vmatprep.subr.mxu0 0.0
      %467 = vmatpush1.msra.mxu0 0.0
      %468 = vmatprep.subr.mxu0 0.0
      %469 = vmatpush1.msra.mxu0 0.0
      %470 = vmatprep.subr.mxu0 0.0
      %471 = vmatpush1.msra.mxu0 0.0
      %472 = vmatprep.subr.mxu0 0.0
      %473 = vmatpush1.msra.mxu0 0.0
      %474 = vmatprep.subr.mxu0 0.0
      %475 = vmatpush1.msra.mxu0 0.0
      %476 = vmatprep.subr.mxu0 0.0
      %477 = vmatpush1.msra.mxu0 0.0
      %478 = vmatprep.subr.mxu0 0.0
      %479 = vmatpush1.msra.mxu0 0.0
      %480 = vmatprep.subr.mxu0 0.0
      %481 = vmatpush1.msra.mxu0 0.0
      %482 = vmatprep.mubr.f32.mxu0 0.0
      %483 = vmatmul.mubr.f32.gmra.mrb[0].mxu0 %v416
      %v484 = vpop.f32.mrb[0].mxu0
      %v485 = vadd.f32 %v412, %v484
      %v486 = vpop.f32.mrb[0].mxu0
      %487 = vdwg.mxu0
      %489 = vset.pattern.permute.xlu0 0
      %490 = vperm.xlu0 %489, %v203
      %v491 = vpop.permute.xlu0 %490
      %v493 = vmul.f32 %v491, %v485
      %v494 = vand.u32 2147483647, %v493
      %vm495 = vcmp.le.f32.partialorder %v494, 0.7853982
      %vm496 = vcmp.lt.s32.totalorder %v493, 0
      %v497 = vand.u32 %v493, 2139095040
      %v498 = vshrl.u32 %v497, 23
      %v499 = vsub.s32 %v498, 127
      %v500 = vand.u32 2147483647, %v493
      %v501 = vand.u32 %v500, 8388607
      %v502 = vor.u32 %v501, 8388608
      %v503 = vsub.s32 0, %v502
      %v504 = vadd.s32 %v499, 1
      %vm505 = vcmp.gt.s32.totalorder %v504, 0
      %v506 = vsel %vm505, %v504, 0
      %v507 = vshrl.u32 %v506, 5
      %v508 = vand.u32 %v506, 31
      %v509 = vsub.s32 32, %v508
      %v510 = vshrl.u32 683565275, %v509
      %v511 = vshll.u32 683565275, %v508
      %v512 = vshrl.u32 2475754826, %v509
      %v513 = vor.u32 %v511, %v512
      %v514 = vshll.u32 2475754826, %v508
      %v515 = vshrl.u32 2131351028, %v509
      %v516 = vor.u32 %v514, %v515
      %v517 = vshll.u32 2131351028, %v508
      %v518 = vshrl.u32 2102212464, %v509
      %v519 = vor.u32 %v517, %v518
      %v520 = vshll.u32 2102212464, %v508
      %v521 = vshrl.u32 920167782, %v509
      %v522 = vor.u32 %v520, %v521
      %v523 = vshll.u32 920167782, %v508
      %v524 = vshrl.u32 1326507024, %v509
      %v525 = vor.u32 %v523, %v524
      %vm526 = vcmp.lt.s32.totalorder %v507, 1
      %vm527 = vcmp.lt.s32.totalorder %v507, 2
      %vm528 = vcmp.lt.s32.totalorder %v507, 3
      %vm529 = vcmp.lt.s32.totalorder %v507, 4
      %v530 = vsel %vm526, %v510, %v513
      %v531 = vsel %vm529, %v519, 2102212464
      %v532 = vsel %vm528, %v516, %v531
      %v533 = vsel %vm527, %v530, %v532
      %v534 = vsel %vm526, %v513, %v516
      %v535 = vsel %vm529, %v522, 920167782
      %v536 = vsel %vm528, %v519, %v535
      %v537 = vsel %vm527, %v534, %v536
      %v538 = vsel %vm526, %v516, %v519
      %v539 = vsel %vm529, %v525, 1326507024
      %v540 = vsel %vm528, %v522, %v539
      %v541 = vsel %vm527, %v538, %v540
      %v542 = vshll.u32 %v502, 8
      %v543 = vmul.u32.u64.compose %v542, %v541
      %v544 = vextract.low.u32 %v543
      %v545 = vextract.high.u32 %v543
      %v546 = vmul.u32.u64.compose %v542, %v537
      %v547 = vextract.low.u32 %v546
      %v548 = vextract.high.u32 %v546
      %v549 = vmul.u32 %v542, %v533
      %v550 = vadd.s32 %v545, %v547
      %vm551 = vc.u32 %v545, %v547
      %v552 = vadd.s32 %v548, 1
      %v553 = vsel %vm551, %v552, %v548
      %v554 = vadd.s32 %v549, %v553
      %v555 = vadd.s32 %v554, 536870912
      %v556 = vshrl.u32 %v555, 30
      %v557 = vshll.u32 %v556, 30
      %v558 = vsub.s32 %v554, %v557
      %vm559 = vcmp.lt.s32.totalorder %v558, 0
      %v560 = vsub.s32 0, %v558
      %v561 = vsel %vm559, %v560, %v558
      %v562 = vclz %v561
      %v563 = vsub.s32 %v562, 2
      %vm564 = vcmp.gt.s32.totalorder 0, %v563
      %v565 = vsel %vm564, 0, %v563
      %v566 = vsub.s32 32, %v565
      %v567 = vshll.u32 %v558, %v565
      %v568 = vshrl.u32 %v550, %v566
      %v569 = vor.u32 %v567, %v568
      %v570 = vsub.s32 4294967266, %v565
      %v571 = vadd.s32 %v570, 127
      %v572 = vshll.u32 %v571, 23
      %v573 = vor.u32 4788187, %v572
      %v574 = vand.u32 2147483647, %v573
      %v576 = vcvt.s32.f32 %v569
      %v577 = vmul.f32 %v576, %v574
      %v578 = vxor.u32 %v577, 2147483648
      %v579 = vsel %vm496, %v578, %v577
      %v580 = vsub.s32 4, %v556
      %v581 = vsel %vm496, %v580, %v556
      %v582 = vsel %vm495, %v493, %v579
      %v583 = vsel %vm495, 0, %v581
      %v584 = vcosq.f32.pop %v582
      %v585 = vsinq.f32.pop %v582
      %vm586 = vweird.f32 %v493
      %v587 = vadd.s32 %v583, 3
      %v588 = vand.u32 %v587, 3
      %vm589 = vcmp.lt.s32.totalorder %v588, 2
      %vm590 = vcmp.eq.s32.totalorder %v588, 0
      %v591 = vxor.u32 %v585, 2147483648
      %v592 = vsel %vm590, %v584, %v591
      %vm593 = vcmp.eq.s32.totalorder %v588, 2
      %v594 = vxor.u32 %v584, 2147483648
      %v595 = vsel %vm593, %v594, %v585
      %v596 = vsel %vm589, %v592, %v595
      %v597 = vsel %vm586, nan, %v596
      %599 = vset.pattern.permute.xlu0 0
      %600 = vperm.xlu0 %599, %v205
      %v601 = vpop.permute.xlu0 %600
      %v603 = vmul.f32 %v601, %v597
      %v604 = vmul.f32 %v603, %v597
      %v605 = vadd.f32 %v485, %v604
      %v606 = vld [vmem:[%s3] sm:$0xff]
      %608 = vset.pattern.permute.xlu0 0
      %609 = vperm.xlu0 %608, %v207
      %v610 = vpop.permute.xlu0 %609
      %vm612 = vcmask 64512
      %v614 = vsel %vm612, %v606, 0
      %616 = vmatprep.subr.mxu0 0.0
      %617 = vmatpush1.msra.mxu0 %v605
      %618 = vmatprep.subr.mxu0 0.0
      %619 = vmatpush1.msra.mxu0 0.0
      %620 = vmatprep.subr.mxu0 0.0
      %621 = vmatpush1.msra.mxu0 0.0
      %622 = vmatprep.subr.mxu0 0.0
      %623 = vmatpush1.msra.mxu0 0.0
      %624 = vmatprep.subr.mxu0 0.0
      %625 = vmatpush1.msra.mxu0 0.0
      %626 = vmatprep.subr.mxu0 0.0
      %627 = vmatpush1.msra.mxu0 0.0
      %628 = vmatprep.subr.mxu0 0.0
      %629 = vmatpush1.msra.mxu0 0.0
      %630 = vmatprep.subr.mxu0 0.0
      %631 = vmatpush1.msra.mxu0 0.0
      %632 = vmatprep.subr.mxu0 0.0
      %633 = vmatpush1.msra.mxu0 0.0
      %634 = vmatprep.subr.mxu0 0.0
      %635 = vmatpush1.msra.mxu0 0.0
      %636 = vmatprep.subr.mxu0 0.0
      %637 = vmatpush1.msra.mxu0 0.0
      %638 = vmatprep.subr.mxu0 0.0
      %639 = vmatpush1.msra.mxu0 0.0
      %640 = vmatprep.subr.mxu0 0.0
      %641 = vmatpush1.msra.mxu0 0.0
      %642 = vmatprep.subr.mxu0 0.0
      %643 = vmatpush1.msra.mxu0 0.0
      %644 = vmatprep.subr.mxu0 0.0
      %645 = vmatpush1.msra.mxu0 0.0
      %646 = vmatprep.subr.mxu0 0.0
      %647 = vmatpush1.msra.mxu0 0.0
      %648 = vmatprep.subr.mxu0 0.0
      %649 = vmatpush1.msra.mxu0 0.0
      %650 = vmatprep.subr.mxu0 0.0
      %651 = vmatpush1.msra.mxu0 0.0
      %652 = vmatprep.subr.mxu0 0.0
      %653 = vmatpush1.msra.mxu0 0.0
      %654 = vmatprep.subr.mxu0 0.0
      %655 = vmatpush1.msra.mxu0 0.0
      %656 = vmatprep.subr.mxu0 0.0
      %657 = vmatpush1.msra.mxu0 0.0
      %658 = vmatprep.subr.mxu0 0.0
      %659 = vmatpush1.msra.mxu0 0.0
      %660 = vmatprep.subr.mxu0 0.0
      %661 = vmatpush1.msra.mxu0 0.0
      %662 = vmatprep.subr.mxu0 0.0
      %663 = vmatpush1.msra.mxu0 0.0
      %664 = vmatprep.subr.mxu0 0.0
      %665 = vmatpush1.msra.mxu0 0.0
      %666 = vmatprep.subr.mxu0 0.0
      %667 = vmatpush1.msra.mxu0 0.0
      %668 = vmatprep.subr.mxu0 0.0
      %669 = vmatpush1.msra.mxu0 0.0
      %670 = vmatprep.subr.mxu0 0.0
      %671 = vmatpush1.msra.mxu0 0.0
      %672 = vmatprep.subr.mxu0 0.0
      %673 = vmatpush1.msra.mxu0 0.0
      %674 = vmatprep.subr.mxu0 0.0
      %675 = vmatpush1.msra.mxu0 0.0
      %676 = vmatprep.subr.mxu0 0.0
      %677 = vmatpush1.msra.mxu0 0.0
      %678 = vmatprep.subr.mxu0 0.0
      %679 = vmatpush1.msra.mxu0 0.0
      %680 = vmatprep.mubr.f32.mxu0 0.0
      %681 = vmatmul.mubr.f32.gmra.mrb[0].mxu0 %v614
      %v682 = vpop.f32.mrb[0].mxu0
      %v683 = vadd.f32 %v610, %v682
      %v684 = vpop.f32.mrb[0].mxu0
      %685 = vdwg.mxu0
      %v686 = vadd.f32 %v196, %v683
      %s687 = scalar_lea.vmem %s1, 48
      %v688 = vld [vmem:[%s687] sm:$0xff]
      %s689 = scalar_lea.vmem %s1, 56
      %v690 = vld [vmem:[%s689] sm:$0xff]
      %s691 = scalar_lea.vmem %s1, 64
      %v692 = vld [vmem:[%s691] sm:$0xff]
      %s693 = scalar_lea.vmem %s1, 72
      %v694 = vld [vmem:[%s693] sm:$0xff]
      %s695 = scalar_lea.vmem %s1, 80
      %v696 = vld [vmem:[%s695] sm:$0xff]
      %s697 = scalar_lea.vmem %s1, 88
      %v698 = vld [vmem:[%s697] sm:$0xff]
      %700 = vset.pattern.permute.xlu0 0
      %701 = vperm.xlu0 %700, %v688
      %v702 = vpop.permute.xlu0 %701
      %v704 = vmul.f32 %v702, %v686
      %v705 = vand.u32 2147483647, %v704
      %vm706 = vcmp.le.f32.partialorder %v705, 0.7853982
      %vm707 = vcmp.lt.s32.totalorder %v704, 0
      %v708 = vand.u32 %v704, 2139095040
      %v709 = vshrl.u32 %v708, 23
      %v710 = vsub.s32 %v709, 127
      %v711 = vand.u32 2147483647, %v704
      %v712 = vand.u32 %v711, 8388607
      %v713 = vor.u32 %v712, 8388608
      %v714 = vsub.s32 0, %v713
      %v715 = vadd.s32 %v710, 1
      %vm716 = vcmp.gt.s32.totalorder %v715, 0
      %v717 = vsel %vm716, %v715, 0
      %v718 = vshrl.u32 %v717, 5
      %v719 = vand.u32 %v717, 31
      %v720 = vsub.s32 32, %v719
      %v721 = vshrl.u32 683565275, %v720
      %v722 = vshll.u32 683565275, %v719
      %v723 = vshrl.u32 2475754826, %v720
      %v724 = vor.u32 %v722, %v723
      %v725 = vshll.u32 2475754826, %v719
      %v726 = vshrl.u32 2131351028, %v720
      %v727 = vor.u32 %v725, %v726
      %v728 = vshll.u32 2131351028, %v719
      %v729 = vshrl.u32 2102212464, %v720
      %v730 = vor.u32 %v728, %v729
      %v731 = vshll.u32 2102212464, %v719
      %v732 = vshrl.u32 920167782, %v720
      %v733 = vor.u32 %v731, %v732
      %v734 = vshll.u32 920167782, %v719
      %v735 = vshrl.u32 1326507024, %v720
      %v736 = vor.u32 %v734, %v735
      %vm737 = vcmp.lt.s32.totalorder %v718, 1
      %vm738 = vcmp.lt.s32.totalorder %v718, 2
      %vm739 = vcmp.lt.s32.totalorder %v718, 3
      %vm740 = vcmp.lt.s32.totalorder %v718, 4
      %v741 = vsel %vm737, %v721, %v724
      %v742 = vsel %vm740, %v730, 2102212464
      %v743 = vsel %vm739, %v727, %v742
      %v744 = vsel %vm738, %v741, %v743
      %v745 = vsel %vm737, %v724, %v727
      %v746 = vsel %vm740, %v733, 920167782
      %v747 = vsel %vm739, %v730, %v746
      %v748 = vsel %vm738, %v745, %v747
      %v749 = vsel %vm737, %v727, %v730
      %v750 = vsel %vm740, %v736, 1326507024
      %v751 = vsel %vm739, %v733, %v750
      %v752 = vsel %vm738, %v749, %v751
      %v753 = vshll.u32 %v713, 8
      %v754 = vmul.u32.u64.compose %v753, %v752
      %v755 = vextract.low.u32 %v754
      %v756 = vextract.high.u32 %v754
      %v757 = vmul.u32.u64.compose %v753, %v748
      %v758 = vextract.low.u32 %v757
      %v759 = vextract.high.u32 %v757
      %v760 = vmul.u32 %v753, %v744
      %v761 = vadd.s32 %v756, %v758
      %vm762 = vc.u32 %v756, %v758
      %v763 = vadd.s32 %v759, 1
      %v764 = vsel %vm762, %v763, %v759
      %v765 = vadd.s32 %v760, %v764
      %v766 = vadd.s32 %v765, 536870912
      %v767 = vshrl.u32 %v766, 30
      %v768 = vshll.u32 %v767, 30
      %v769 = vsub.s32 %v765, %v768
      %vm770 = vcmp.lt.s32.totalorder %v769, 0
      %v771 = vsub.s32 0, %v769
      %v772 = vsel %vm770, %v771, %v769
      %v773 = vclz %v772
      %v774 = vsub.s32 %v773, 2
      %vm775 = vcmp.gt.s32.totalorder 0, %v774
      %v776 = vsel %vm775, 0, %v774
      %v777 = vsub.s32 32, %v776
      %v778 = vshll.u32 %v769, %v776
      %v779 = vshrl.u32 %v761, %v777
      %v780 = vor.u32 %v778, %v779
      %v781 = vsub.s32 4294967266, %v776
      %v782 = vadd.s32 %v781, 127
      %v783 = vshll.u32 %v782, 23
      %v784 = vor.u32 4788187, %v783
      %v785 = vand.u32 2147483647, %v784
      %v787 = vcvt.s32.f32 %v780
      %v788 = vmul.f32 %v787, %v785
      %v789 = vxor.u32 %v788, 2147483648
      %v790 = vsel %vm707, %v789, %v788
      %v791 = vsub.s32 4, %v767
      %v792 = vsel %vm707, %v791, %v767
      %v793 = vsel %vm706, %v704, %v790
      %v794 = vsel %vm706, 0, %v792
      %v795 = vcosq.f32.pop %v793
      %v796 = vsinq.f32.pop %v793
      %vm797 = vweird.f32 %v704
      %v798 = vadd.s32 %v794, 3
      %v799 = vand.u32 %v798, 3
      %vm800 = vcmp.lt.s32.totalorder %v799, 2
      %vm801 = vcmp.eq.s32.totalorder %v799, 0
      %v802 = vxor.u32 %v796, 2147483648
      %v803 = vsel %vm801, %v795, %v802
      %vm804 = vcmp.eq.s32.totalorder %v799, 2
      %v805 = vxor.u32 %v795, 2147483648
      %v806 = vsel %vm804, %v805, %v796
      %v807 = vsel %vm800, %v803, %v806
      %v808 = vsel %vm797, nan, %v807
      %810 = vset.pattern.permute.xlu0 0
      %811 = vperm.xlu0 %810, %v690
      %v812 = vpop.permute.xlu0 %811
      %v814 = vmul.f32 %v812, %v808
      %v815 = vmul.f32 %v814, %v808
      %v816 = vadd.f32 %v686, %v815
      %817 = vst [vmem:[#allocation2 + $0x8] sm:$0xff] %v816
      %v818 = vld [vmem:[#allocation2] sm:$0xff]
      %v819 = vld [vmem:[#allocation2 + $0x8] sm:$0xff]
      %822 = vrot.lane.b32.xlu0 %v818, 9
      %v823 = vpop.permute.xlu0 %822
      %824 = vrot.lane.b32.xlu0 %v819, 9
      %v825 = vpop.permute.xlu0 %824
      %vm826 = vcmask 72704
      %v827 = vsel %vm826, %v823, %v825
      %829 = vst [vmem:[#allocation3] sm:$0xff] %v827
      %v830 = vld [vmem:[#allocation2] sm:$0xff]
      %v831 = vld [vmem:[#allocation2 + $0x8] sm:$0xff]
      %834 = vrot.lane.b32.xlu0 %v830, 6
      %v835 = vpop.permute.xlu0 %834
      %836 = vrot.lane.b32.xlu0 %v831, 6
      %v837 = vpop.permute.xlu0 %836
      %vm838 = vcmask 48128
      %v839 = vsel %vm838, %v835, %v837
      %841 = vst [vmem:[#allocation3 + $0x8] sm:$0xff] %v839
      %v842 = vld [vmem:[#allocation2] sm:$0xff]
      %v843 = vld [vmem:[#allocation2 + $0x8] sm:$0xff]
      %846 = vrot.lane.b32.xlu0 %v842, 3
      %v847 = vpop.permute.xlu0 %846
      %848 = vrot.lane.b32.xlu0 %v843, 3
      %v849 = vpop.permute.xlu0 %848
      %v850 = vsel %vm335, %v847, %v849
      %852 = vst [vmem:[#allocation3 + $0x10] sm:$0xff] %v850
      %v853 = vld [vmem:[#allocation2 + $0x8] sm:$0xff]
      %854 = vst [vmem:[#allocation3 + $0x18] sm:$0xff] %v853
      %v855 = vld [vmem:[#allocation2 + $0x8] sm:$0xff]
      %v856 = vld [vmem:[#allocation2 + $0x10] sm:$0xff]
      %859 = vrot.lane.b32.xlu0 %v855, 125
      %v860 = vpop.permute.xlu0 %859
      %861 = vrot.lane.b32.xlu0 %v856, 125
      %v862 = vpop.permute.xlu0 %861
      %v863 = vsel %vm397, %v860, %v862
      %865 = vst [vmem:[#allocation3 + $0x20] sm:$0xff] %v863
      %v866 = vld [vmem:[#allocation2 + $0x8] sm:$0xff]
      %v867 = vld [vmem:[#allocation2 + $0x10] sm:$0xff]
      %870 = vrot.lane.b32.xlu0 %v866, 122
      %v871 = vpop.permute.xlu0 %870
      %872 = vrot.lane.b32.xlu0 %v867, 122
      %v873 = vpop.permute.xlu0 %872
      %vm874 = vcmask 998400
      %v875 = vsel %vm874, %v871, %v873
      %877 = vst [vmem:[#allocation3 + $0x28] sm:$0xff] %v875
      %v878 = vld [vmem:[#allocation2 + $0x8] sm:$0xff]
      %v879 = vld [vmem:[#allocation2 + $0x10] sm:$0xff]
      %882 = vrot.lane.b32.xlu0 %v878, 119
      %v883 = vpop.permute.xlu0 %882
      %884 = vrot.lane.b32.xlu0 %v879, 119
      %v885 = vpop.permute.xlu0 %884
      %vm886 = vcmask 973824
      %v887 = vsel %vm886, %v883, %v885
      %889 = vst [vmem:[#allocation3 + $0x30] sm:$0xff] %v887
      %s890 = scalar_lea.vmem %s2, 8
      %v891 = vld [vmem:[%s890] sm:$0xff]
      %v892 = vld [vmem:[#allocation3] sm:$0xff]
      %v893 = vld [vmem:[#allocation3 + $0x8] sm:$0xff]
      %v894 = vld [vmem:[#allocation3 + $0x10] sm:$0xff]
      %v895 = vld [vmem:[#allocation3 + $0x18] sm:$0xff]
      %v896 = vld [vmem:[#allocation3 + $0x20] sm:$0xff]
      %v897 = vld [vmem:[#allocation3 + $0x28] sm:$0xff]
      %v898 = vld [vmem:[#allocation3 + $0x30] sm:$0xff]
      %900 = vset.pattern.permute.xlu0 0
      %901 = vperm.xlu0 %900, %v692
      %v902 = vpop.permute.xlu0 %901
      %v905 = vsel %vm414, %v891, 0
      %907 = vmatprep.subr.mxu0 0.0
      %908 = vmatpush1.msra.mxu0 %v892
      %909 = vmatprep.subr.mxu0 0.0
      %910 = vmatpush1.msra.mxu0 %v893
      %911 = vmatprep.subr.mxu0 0.0
      %912 = vmatpush1.msra.mxu0 %v894
      %913 = vmatprep.subr.mxu0 0.0
      %914 = vmatpush1.msra.mxu0 %v895
      %915 = vmatprep.subr.mxu0 0.0
      %916 = vmatpush1.msra.mxu0 %v896
      %917 = vmatprep.subr.mxu0 0.0
      %918 = vmatpush1.msra.mxu0 %v897
      %919 = vmatprep.subr.mxu0 0.0
      %920 = vmatpush1.msra.mxu0 %v898
      %921 = vmatprep.subr.mxu0 0.0
      %922 = vmatpush1.msra.mxu0 0.0
      %923 = vmatprep.subr.mxu0 0.0
      %924 = vmatpush1.msra.mxu0 0.0
      %925 = vmatprep.subr.mxu0 0.0
      %926 = vmatpush1.msra.mxu0 0.0
      %927 = vmatprep.subr.mxu0 0.0
      %928 = vmatpush1.msra.mxu0 0.0
      %929 = vmatprep.subr.mxu0 0.0
      %930 = vmatpush1.msra.mxu0 0.0
      %931 = vmatprep.subr.mxu0 0.0
      %932 = vmatpush1.msra.mxu0 0.0
      %933 = vmatprep.subr.mxu0 0.0
      %934 = vmatpush1.msra.mxu0 0.0
      %935 = vmatprep.subr.mxu0 0.0
      %936 = vmatpush1.msra.mxu0 0.0
      %937 = vmatprep.subr.mxu0 0.0
      %938 = vmatpush1.msra.mxu0 0.0
      %939 = vmatprep.subr.mxu0 0.0
      %940 = vmatpush1.msra.mxu0 0.0
      %941 = vmatprep.subr.mxu0 0.0
      %942 = vmatpush1.msra.mxu0 0.0
      %943 = vmatprep.subr.mxu0 0.0
      %944 = vmatpush1.msra.mxu0 0.0
      %945 = vmatprep.subr.mxu0 0.0
      %946 = vmatpush1.msra.mxu0 0.0
      %947 = vmatprep.subr.mxu0 0.0
      %948 = vmatpush1.msra.mxu0 0.0
      %949 = vmatprep.subr.mxu0 0.0
      %950 = vmatpush1.msra.mxu0 0.0
      %951 = vmatprep.subr.mxu0 0.0
      %952 = vmatpush1.msra.mxu0 0.0
      %953 = vmatprep.subr.mxu0 0.0
      %954 = vmatpush1.msra.mxu0 0.0
      %955 = vmatprep.subr.mxu0 0.0
      %956 = vmatpush1.msra.mxu0 0.0
      %957 = vmatprep.subr.mxu0 0.0
      %958 = vmatpush1.msra.mxu0 0.0
      %959 = vmatprep.subr.mxu0 0.0
      %960 = vmatpush1.msra.mxu0 0.0
      %961 = vmatprep.subr.mxu0 0.0
      %962 = vmatpush1.msra.mxu0 0.0
      %963 = vmatprep.subr.mxu0 0.0
      %964 = vmatpush1.msra.mxu0 0.0
      %965 = vmatprep.subr.mxu0 0.0
      %966 = vmatpush1.msra.mxu0 0.0
      %967 = vmatprep.subr.mxu0 0.0
      %968 = vmatpush1.msra.mxu0 0.0
      %969 = vmatprep.subr.mxu0 0.0
      %970 = vmatpush1.msra.mxu0 0.0
      %971 = vmatprep.mubr.f32.mxu0 0.0
      %972 = vmatmul.mubr.f32.gmra.mrb[0].mxu0 %v905
      %v973 = vpop.f32.mrb[0].mxu0
      %v974 = vadd.f32 %v902, %v973
      %v975 = vpop.f32.mrb[0].mxu0
      %976 = vdwg.mxu0
      %978 = vset.pattern.permute.xlu0 0
      %979 = vperm.xlu0 %978, %v694
      %v980 = vpop.permute.xlu0 %979
      %v982 = vmul.f32 %v980, %v974
      %v983 = vand.u32 2147483647, %v982
      %vm984 = vcmp.le.f32.partialorder %v983, 0.7853982
      %vm985 = vcmp.lt.s32.totalorder %v982, 0
      %v986 = vand.u32 %v982, 2139095040
      %v987 = vshrl.u32 %v986, 23
      %v988 = vsub.s32 %v987, 127
      %v989 = vand.u32 2147483647, %v982
      %v990 = vand.u32 %v989, 8388607
      %v991 = vor.u32 %v990, 8388608
      %v992 = vsub.s32 0, %v991
      %v993 = vadd.s32 %v988, 1
      %vm994 = vcmp.gt.s32.totalorder %v993, 0
      %v995 = vsel %vm994, %v993, 0
      %v996 = vshrl.u32 %v995, 5
      %v997 = vand.u32 %v995, 31
      %v998 = vsub.s32 32, %v997
      %v999 = vshrl.u32 683565275, %v998
      %v1000 = vshll.u32 683565275, %v997
      %v1001 = vshrl.u32 2475754826, %v998
      %v1002 = vor.u32 %v1000, %v1001
      %v1003 = vshll.u32 2475754826, %v997
      %v1004 = vshrl.u32 2131351028, %v998
      %v1005 = vor.u32 %v1003, %v1004
      %v1006 = vshll.u32 2131351028, %v997
      %v1007 = vshrl.u32 2102212464, %v998
      %v1008 = vor.u32 %v1006, %v1007
      %v1009 = vshll.u32 2102212464, %v997
      %v1010 = vshrl.u32 920167782, %v998
      %v1011 = vor.u32 %v1009, %v1010
      %v1012 = vshll.u32 920167782, %v997
      %v1013 = vshrl.u32 1326507024, %v998
      %v1014 = vor.u32 %v1012, %v1013
      %vm1015 = vcmp.lt.s32.totalorder %v996, 1
      %vm1016 = vcmp.lt.s32.totalorder %v996, 2
      %vm1017 = vcmp.lt.s32.totalorder %v996, 3
      %vm1018 = vcmp.lt.s32.totalorder %v996, 4
      %v1019 = vsel %vm1015, %v999, %v1002
      %v1020 = vsel %vm1018, %v1008, 2102212464
      %v1021 = vsel %vm1017, %v1005, %v1020
      %v1022 = vsel %vm1016, %v1019, %v1021
      %v1023 = vsel %vm1015, %v1002, %v1005
      %v1024 = vsel %vm1018, %v1011, 920167782
      %v1025 = vsel %vm1017, %v1008, %v1024
      %v1026 = vsel %vm1016, %v1023, %v1025
      %v1027 = vsel %vm1015, %v1005, %v1008
      %v1028 = vsel %vm1018, %v1014, 1326507024
      %v1029 = vsel %vm1017, %v1011, %v1028
      %v1030 = vsel %vm1016, %v1027, %v1029
      %v1031 = vshll.u32 %v991, 8
      %v1032 = vmul.u32.u64.compose %v1031, %v1030
      %v1033 = vextract.low.u32 %v1032
      %v1034 = vextract.high.u32 %v1032
      %v1035 = vmul.u32.u64.compose %v1031, %v1026
      %v1036 = vextract.low.u32 %v1035
      %v1037 = vextract.high.u32 %v1035
      %v1038 = vmul.u32 %v1031, %v1022
      %v1039 = vadd.s32 %v1034, %v1036
      %vm1040 = vc.u32 %v1034, %v1036
      %v1041 = vadd.s32 %v1037, 1
      %v1042 = vsel %vm1040, %v1041, %v1037
      %v1043 = vadd.s32 %v1038, %v1042
      %v1044 = vadd.s32 %v1043, 536870912
      %v1045 = vshrl.u32 %v1044, 30
      %v1046 = vshll.u32 %v1045, 30
      %v1047 = vsub.s32 %v1043, %v1046
      %vm1048 = vcmp.lt.s32.totalorder %v1047, 0
      %v1049 = vsub.s32 0, %v1047
      %v1050 = vsel %vm1048, %v1049, %v1047
      %v1051 = vclz %v1050
      %v1052 = vsub.s32 %v1051, 2
      %vm1053 = vcmp.gt.s32.totalorder 0, %v1052
      %v1054 = vsel %vm1053, 0, %v1052
      %v1055 = vsub.s32 32, %v1054
      %v1056 = vshll.u32 %v1047, %v1054
      %v1057 = vshrl.u32 %v1039, %v1055
      %v1058 = vor.u32 %v1056, %v1057
      %v1059 = vsub.s32 4294967266, %v1054
      %v1060 = vadd.s32 %v1059, 127
      %v1061 = vshll.u32 %v1060, 23
      %v1062 = vor.u32 4788187, %v1061
      %v1063 = vand.u32 2147483647, %v1062
      %v1065 = vcvt.s32.f32 %v1058
      %v1066 = vmul.f32 %v1065, %v1063
      %v1067 = vxor.u32 %v1066, 2147483648
      %v1068 = vsel %vm985, %v1067, %v1066
      %v1069 = vsub.s32 4, %v1045
      %v1070 = vsel %vm985, %v1069, %v1045
      %v1071 = vsel %vm984, %v982, %v1068
      %v1072 = vsel %vm984, 0, %v1070
      %v1073 = vcosq.f32.pop %v1071
      %v1074 = vsinq.f32.pop %v1071
      %vm1075 = vweird.f32 %v982
      %v1076 = vadd.s32 %v1072, 3
      %v1077 = vand.u32 %v1076, 3
      %vm1078 = vcmp.lt.s32.totalorder %v1077, 2
      %vm1079 = vcmp.eq.s32.totalorder %v1077, 0
      %v1080 = vxor.u32 %v1074, 2147483648
      %v1081 = vsel %vm1079, %v1073, %v1080
      %vm1082 = vcmp.eq.s32.totalorder %v1077, 2
      %v1083 = vxor.u32 %v1073, 2147483648
      %v1084 = vsel %vm1082, %v1083, %v1074
      %v1085 = vsel %vm1078, %v1081, %v1084
      %v1086 = vsel %vm1075, nan, %v1085
      %1088 = vset.pattern.permute.xlu0 0
      %1089 = vperm.xlu0 %1088, %v696
      %v1090 = vpop.permute.xlu0 %1089
      %v1092 = vmul.f32 %v1090, %v1086
      %v1093 = vmul.f32 %v1092, %v1086
      %v1094 = vadd.f32 %v974, %v1093
      %s1095 = scalar_lea.vmem %s3, 8
      %v1096 = vld [vmem:[%s1095] sm:$0xff]
      %1098 = vset.pattern.permute.xlu0 0
      %1099 = vperm.xlu0 %1098, %v698
      %v1100 = vpop.permute.xlu0 %1099
      %v1103 = vsel %vm612, %v1096, 0
      %1105 = vmatprep.subr.mxu0 0.0
      %1106 = vmatpush1.msra.mxu0 %v1094
      %1107 = vmatprep.subr.mxu0 0.0
      %1108 = vmatpush1.msra.mxu0 0.0
      %1109 = vmatprep.subr.mxu0 0.0
      %1110 = vmatpush1.msra.mxu0 0.0
      %1111 = vmatprep.subr.mxu0 0.0
      %1112 = vmatpush1.msra.mxu0 0.0
      %1113 = vmatprep.subr.mxu0 0.0
      %1114 = vmatpush1.msra.mxu0 0.0
      %1115 = vmatprep.subr.mxu0 0.0
      %1116 = vmatpush1.msra.mxu0 0.0
      %1117 = vmatprep.subr.mxu0 0.0
      %1118 = vmatpush1.msra.mxu0 0.0
      %1119 = vmatprep.subr.mxu0 0.0
      %1120 = vmatpush1.msra.mxu0 0.0
      %1121 = vmatprep.subr.mxu0 0.0
      %1122 = vmatpush1.msra.mxu0 0.0
      %1123 = vmatprep.subr.mxu0 0.0
      %1124 = vmatpush1.msra.mxu0 0.0
      %1125 = vmatprep.subr.mxu0 0.0
      %1126 = vmatpush1.msra.mxu0 0.0
      %1127 = vmatprep.subr.mxu0 0.0
      %1128 = vmatpush1.msra.mxu0 0.0
      %1129 = vmatprep.subr.mxu0 0.0
      %1130 = vmatpush1.msra.mxu0 0.0
      %1131 = vmatprep.subr.mxu0 0.0
      %1132 = vmatpush1.msra.mxu0 0.0
      %1133 = vmatprep.subr.mxu0 0.0
      %1134 = vmatpush1.msra.mxu0 0.0
      %1135 = vmatprep.subr.mxu0 0.0
      %1136 = vmatpush1.msra.mxu0 0.0
      %1137 = vmatprep.subr.mxu0 0.0
      %1138 = vmatpush1.msra.mxu0 0.0
      %1139 = vmatprep.subr.mxu0 0.0
      %1140 = vmatpush1.msra.mxu0 0.0
      %1141 = vmatprep.subr.mxu0 0.0
      %1142 = vmatpush1.msra.mxu0 0.0
      %1143 = vmatprep.subr.mxu0 0.0
      %1144 = vmatpush1.msra.mxu0 0.0
      %1145 = vmatprep.subr.mxu0 0.0
      %1146 = vmatpush1.msra.mxu0 0.0
      %1147 = vmatprep.subr.mxu0 0.0
      %1148 = vmatpush1.msra.mxu0 0.0
      %1149 = vmatprep.subr.mxu0 0.0
      %1150 = vmatpush1.msra.mxu0 0.0
      %1151 = vmatprep.subr.mxu0 0.0
      %1152 = vmatpush1.msra.mxu0 0.0
      %1153 = vmatprep.subr.mxu0 0.0
      %1154 = vmatpush1.msra.mxu0 0.0
      %1155 = vmatprep.subr.mxu0 0.0
      %1156 = vmatpush1.msra.mxu0 0.0
      %1157 = vmatprep.subr.mxu0 0.0
      %1158 = vmatpush1.msra.mxu0 0.0
      %1159 = vmatprep.subr.mxu0 0.0
      %1160 = vmatpush1.msra.mxu0 0.0
      %1161 = vmatprep.subr.mxu0 0.0
      %1162 = vmatpush1.msra.mxu0 0.0
      %1163 = vmatprep.subr.mxu0 0.0
      %1164 = vmatpush1.msra.mxu0 0.0
      %1165 = vmatprep.subr.mxu0 0.0
      %1166 = vmatpush1.msra.mxu0 0.0
      %1167 = vmatprep.subr.mxu0 0.0
      %1168 = vmatpush1.msra.mxu0 0.0
      %1169 = vmatprep.mubr.f32.mxu0 0.0
      %1170 = vmatmul.mubr.f32.gmra.mrb[0].mxu0 %v1103
      %v1171 = vpop.f32.mrb[0].mxu0
      %v1172 = vadd.f32 %v1100, %v1171
      %v1173 = vpop.f32.mrb[0].mxu0
      %1174 = vdwg.mxu0
      %v1175 = vadd.f32 %v686, %v1172
      %s1176 = scalar_lea.vmem %s1, 96
      %v1177 = vld [vmem:[%s1176] sm:$0xff]
      %s1178 = scalar_lea.vmem %s1, 104
      %v1179 = vld [vmem:[%s1178] sm:$0xff]
      %s1180 = scalar_lea.vmem %s1, 112
      %v1181 = vld [vmem:[%s1180] sm:$0xff]
      %s1182 = scalar_lea.vmem %s1, 120
      %v1183 = vld [vmem:[%s1182] sm:$0xff]
      %s1184 = scalar_lea.vmem %s1, 128
      %v1185 = vld [vmem:[%s1184] sm:$0xff]
      %s1186 = scalar_lea.vmem %s1, 136
      %v1187 = vld [vmem:[%s1186] sm:$0xff]
      %1189 = vset.pattern.permute.xlu0 0
      %1190 = vperm.xlu0 %1189, %v1177
      %v1191 = vpop.permute.xlu0 %1190
      %v1193 = vmul.f32 %v1191, %v1175
      %v1194 = vand.u32 2147483647, %v1193
      %vm1195 = vcmp.le.f32.partialorder %v1194, 0.7853982
      %vm1196 = vcmp.lt.s32.totalorder %v1193, 0
      %v1197 = vand.u32 %v1193, 2139095040
      %v1198 = vshrl.u32 %v1197, 23
      %v1199 = vsub.s32 %v1198, 127
      %v1200 = vand.u32 2147483647, %v1193
      %v1201 = vand.u32 %v1200, 8388607
      %v1202 = vor.u32 %v1201, 8388608
      %v1203 = vsub.s32 0, %v1202
      %v1204 = vadd.s32 %v1199, 1
      %vm1205 = vcmp.gt.s32.totalorder %v1204, 0
      %v1206 = vsel %vm1205, %v1204, 0
      %v1207 = vshrl.u32 %v1206, 5
      %v1208 = vand.u32 %v1206, 31
      %v1209 = vsub.s32 32, %v1208
      %v1210 = vshrl.u32 683565275, %v1209
      %v1211 = vshll.u32 683565275, %v1208
      %v1212 = vshrl.u32 2475754826, %v1209
      %v1213 = vor.u32 %v1211, %v1212
      %v1214 = vshll.u32 2475754826, %v1208
      %v1215 = vshrl.u32 2131351028, %v1209
      %v1216 = vor.u32 %v1214, %v1215
      %v1217 = vshll.u32 2131351028, %v1208
      %v1218 = vshrl.u32 2102212464, %v1209
      %v1219 = vor.u32 %v1217, %v1218
      %v1220 = vshll.u32 2102212464, %v1208
      %v1221 = vshrl.u32 920167782, %v1209
      %v1222 = vor.u32 %v1220, %v1221
      %v1223 = vshll.u32 920167782, %v1208
      %v1224 = vshrl.u32 1326507024, %v1209
      %v1225 = vor.u32 %v1223, %v1224
      %vm1226 = vcmp.lt.s32.totalorder %v1207, 1
      %vm1227 = vcmp.lt.s32.totalorder %v1207, 2
      %vm1228 = vcmp.lt.s32.totalorder %v1207, 3
      %vm1229 = vcmp.lt.s32.totalorder %v1207, 4
      %v1230 = vsel %vm1226, %v1210, %v1213
      %v1231 = vsel %vm1229, %v1219, 2102212464
      %v1232 = vsel %vm1228, %v1216, %v1231
      %v1233 = vsel %vm1227, %v1230, %v1232
      %v1234 = vsel %vm1226, %v1213, %v1216
      %v1235 = vsel %vm1229, %v1222, 920167782
      %v1236 = vsel %vm1228, %v1219, %v1235
      %v1237 = vsel %vm1227, %v1234, %v1236
      %v1238 = vsel %vm1226, %v1216, %v1219
      %v1239 = vsel %vm1229, %v1225, 1326507024
      %v1240 = vsel %vm1228, %v1222, %v1239
      %v1241 = vsel %vm1227, %v1238, %v1240
      %v1242 = vshll.u32 %v1202, 8
      %v1243 = vmul.u32.u64.compose %v1242, %v1241
      %v1244 = vextract.low.u32 %v1243
      %v1245 = vextract.high.u32 %v1243
      %v1246 = vmul.u32.u64.compose %v1242, %v1237
      %v1247 = vextract.low.u32 %v1246
      %v1248 = vextract.high.u32 %v1246
      %v1249 = vmul.u32 %v1242, %v1233
      %v1250 = vadd.s32 %v1245, %v1247
      %vm1251 = vc.u32 %v1245, %v1247
      %v1252 = vadd.s32 %v1248, 1
      %v1253 = vsel %vm1251, %v1252, %v1248
      %v1254 = vadd.s32 %v1249, %v1253
      %v1255 = vadd.s32 %v1254, 536870912
      %v1256 = vshrl.u32 %v1255, 30
      %v1257 = vshll.u32 %v1256, 30
      %v1258 = vsub.s32 %v1254, %v1257
      %vm1259 = vcmp.lt.s32.totalorder %v1258, 0
      %v1260 = vsub.s32 0, %v1258
      %v1261 = vsel %vm1259, %v1260, %v1258
      %v1262 = vclz %v1261
      %v1263 = vsub.s32 %v1262, 2
      %vm1264 = vcmp.gt.s32.totalorder 0, %v1263
      %v1265 = vsel %vm1264, 0, %v1263
      %v1266 = vsub.s32 32, %v1265
      %v1267 = vshll.u32 %v1258, %v1265
      %v1268 = vshrl.u32 %v1250, %v1266
      %v1269 = vor.u32 %v1267, %v1268
      %v1270 = vsub.s32 4294967266, %v1265
      %v1271 = vadd.s32 %v1270, 127
      %v1272 = vshll.u32 %v1271, 23
      %v1273 = vor.u32 4788187, %v1272
      %v1274 = vand.u32 2147483647, %v1273
      %v1276 = vcvt.s32.f32 %v1269
      %v1277 = vmul.f32 %v1276, %v1274
      %v1278 = vxor.u32 %v1277, 2147483648
      %v1279 = vsel %vm1196, %v1278, %v1277
      %v1280 = vsub.s32 4, %v1256
      %v1281 = vsel %vm1196, %v1280, %v1256
      %v1282 = vsel %vm1195, %v1193, %v1279
      %v1283 = vsel %vm1195, 0, %v1281
      %v1284 = vcosq.f32.pop %v1282
      %v1285 = vsinq.f32.pop %v1282
      %vm1286 = vweird.f32 %v1193
      %v1287 = vadd.s32 %v1283, 3
      %v1288 = vand.u32 %v1287, 3
      %vm1289 = vcmp.lt.s32.totalorder %v1288, 2
      %vm1290 = vcmp.eq.s32.totalorder %v1288, 0
      %v1291 = vxor.u32 %v1285, 2147483648
      %v1292 = vsel %vm1290, %v1284, %v1291
      %vm1293 = vcmp.eq.s32.totalorder %v1288, 2
      %v1294 = vxor.u32 %v1284, 2147483648
      %v1295 = vsel %vm1293, %v1294, %v1285
      %v1296 = vsel %vm1289, %v1292, %v1295
      %v1297 = vsel %vm1286, nan, %v1296
      %1299 = vset.pattern.permute.xlu0 0
      %1300 = vperm.xlu0 %1299, %v1179
      %v1301 = vpop.permute.xlu0 %1300
      %v1303 = vmul.f32 %v1301, %v1297
      %v1304 = vmul.f32 %v1303, %v1297
      %v1305 = vadd.f32 %v1175, %v1304
      %1306 = vst [vmem:[#allocation2 + $0x8] sm:$0xff] %v1305
      %v1307 = vld [vmem:[#allocation2] sm:$0xff]
      %v1308 = vld [vmem:[#allocation2 + $0x8] sm:$0xff]
      %1311 = vrot.lane.b32.xlu0 %v1307, 27
      %v1312 = vpop.permute.xlu0 %1311
      %1313 = vrot.lane.b32.xlu0 %v1308, 27
      %v1314 = vpop.permute.xlu0 %1313
      %vm1315 = vcmask 220160
      %v1316 = vsel %vm1315, %v1312, %v1314
      %1318 = vst [vmem:[#allocation3] sm:$0xff] %v1316
      %v1319 = vld [vmem:[#allocation2] sm:$0xff]
      %v1320 = vld [vmem:[#allocation2 + $0x8] sm:$0xff]
      %1323 = vrot.lane.b32.xlu0 %v1319, 18
      %v1324 = vpop.permute.xlu0 %1323
      %1325 = vrot.lane.b32.xlu0 %v1320, 18
      %v1326 = vpop.permute.xlu0 %1325
      %vm1327 = vcmask 146432
      %v1328 = vsel %vm1327, %v1324, %v1326
      %1330 = vst [vmem:[#allocation3 + $0x8] sm:$0xff] %v1328
      %v1331 = vld [vmem:[#allocation2] sm:$0xff]
      %v1332 = vld [vmem:[#allocation2 + $0x8] sm:$0xff]
      %1335 = vrot.lane.b32.xlu0 %v1331, 9
      %v1336 = vpop.permute.xlu0 %1335
      %1337 = vrot.lane.b32.xlu0 %v1332, 9
      %v1338 = vpop.permute.xlu0 %1337
      %v1339 = vsel %vm826, %v1336, %v1338
      %1341 = vst [vmem:[#allocation3 + $0x10] sm:$0xff] %v1339
      %v1342 = vld [vmem:[#allocation2 + $0x8] sm:$0xff]
      %1343 = vst [vmem:[#allocation3 + $0x18] sm:$0xff] %v1342
      %v1344 = vld [vmem:[#allocation2 + $0x8] sm:$0xff]
      %v1345 = vld [vmem:[#allocation2 + $0x10] sm:$0xff]
      %1348 = vrot.lane.b32.xlu0 %v1344, 119
      %v1349 = vpop.permute.xlu0 %1348
      %1350 = vrot.lane.b32.xlu0 %v1345, 119
      %v1351 = vpop.permute.xlu0 %1350
      %v1352 = vsel %vm886, %v1349, %v1351
      %1354 = vst [vmem:[#allocation3 + $0x20] sm:$0xff] %v1352
      %v1355 = vld [vmem:[#allocation2 + $0x8] sm:$0xff]
      %v1356 = vld [vmem:[#allocation2 + $0x10] sm:$0xff]
      %1359 = vrot.lane.b32.xlu0 %v1355, 110
      %v1360 = vpop.permute.xlu0 %1359
      %1361 = vrot.lane.b32.xlu0 %v1356, 110
      %v1362 = vpop.permute.xlu0 %1361
      %vm1363 = vcmask 900096
      %v1364 = vsel %vm1363, %v1360, %v1362
      %1366 = vst [vmem:[#allocation3 + $0x28] sm:$0xff] %v1364
      %v1367 = vld [vmem:[#allocation2 + $0x8] sm:$0xff]
      %v1368 = vld [vmem:[#allocation2 + $0x10] sm:$0xff]
      %1371 = vrot.lane.b32.xlu0 %v1367, 101
      %v1372 = vpop.permute.xlu0 %1371
      %1373 = vrot.lane.b32.xlu0 %v1368, 101
      %v1374 = vpop.permute.xlu0 %1373
      %vm1375 = vcmask 826368
      %v1376 = vsel %vm1375, %v1372, %v1374
      %1378 = vst [vmem:[#allocation3 + $0x30] sm:$0xff] %v1376
      %s1379 = scalar_lea.vmem %s2, 16
      %v1380 = vld [vmem:[%s1379] sm:$0xff]
      %v1381 = vld [vmem:[#allocation3] sm:$0xff]
      %v1382 = vld [vmem:[#allocation3 + $0x8] sm:$0xff]
      %v1383 = vld [vmem:[#allocation3 + $0x10] sm:$0xff]
      %v1384 = vld [vmem:[#allocation3 + $0x18] sm:$0xff]
      %v1385 = vld [vmem:[#allocation3 + $0x20] sm:$0xff]
      %v1386 = vld [vmem:[#allocation3 + $0x28] sm:$0xff]
      %v1387 = vld [vmem:[#allocation3 + $0x30] sm:$0xff]
      %1389 = vset.pattern.permute.xlu0 0
      %1390 = vperm.xlu0 %1389, %v1181
      %v1391 = vpop.permute.xlu0 %1390
      %v1394 = vsel %vm414, %v1380, 0
      %1396 = vmatprep.subr.mxu0 0.0
      %1397 = vmatpush1.msra.mxu0 %v1381
      %1398 = vmatprep.subr.mxu0 0.0
      %1399 = vmatpush1.msra.mxu0 %v1382
      %1400 = vmatprep.subr.mxu0 0.0
      %1401 = vmatpush1.msra.mxu0 %v1383
      %1402 = vmatprep.subr.mxu0 0.0
      %1403 = vmatpush1.msra.mxu0 %v1384
      %1404 = vmatprep.subr.mxu0 0.0
      %1405 = vmatpush1.msra.mxu0 %v1385
      %1406 = vmatprep.subr.mxu0 0.0
      %1407 = vmatpush1.msra.mxu0 %v1386
      %1408 = vmatprep.subr.mxu0 0.0
      %1409 = vmatpush1.msra.mxu0 %v1387
      %1410 = vmatprep.subr.mxu0 0.0
      %1411 = vmatpush1.msra.mxu0 0.0
      %1412 = vmatprep.subr.mxu0 0.0
      %1413 = vmatpush1.msra.mxu0 0.0
      %1414 = vmatprep.subr.mxu0 0.0
      %1415 = vmatpush1.msra.mxu0 0.0
      %1416 = vmatprep.subr.mxu0 0.0
      %1417 = vmatpush1.msra.mxu0 0.0
      %1418 = vmatprep.subr.mxu0 0.0
      %1419 = vmatpush1.msra.mxu0 0.0
      %1420 = vmatprep.subr.mxu0 0.0
      %1421 = vmatpush1.msra.mxu0 0.0
      %1422 = vmatprep.subr.mxu0 0.0
      %1423 = vmatpush1.msra.mxu0 0.0
      %1424 = vmatprep.subr.mxu0 0.0
      %1425 = vmatpush1.msra.mxu0 0.0
      %1426 = vmatprep.subr.mxu0 0.0
      %1427 = vmatpush1.msra.mxu0 0.0
      %1428 = vmatprep.subr.mxu0 0.0
      %1429 = vmatpush1.msra.mxu0 0.0
      %1430 = vmatprep.subr.mxu0 0.0
      %1431 = vmatpush1.msra.mxu0 0.0
      %1432 = vmatprep.subr.mxu0 0.0
      %1433 = vmatpush1.msra.mxu0 0.0
      %1434 = vmatprep.subr.mxu0 0.0
      %1435 = vmatpush1.msra.mxu0 0.0
      %1436 = vmatprep.subr.mxu0 0.0
      %1437 = vmatpush1.msra.mxu0 0.0
      %1438 = vmatprep.subr.mxu0 0.0
      %1439 = vmatpush1.msra.mxu0 0.0
      %1440 = vmatprep.subr.mxu0 0.0
      %1441 = vmatpush1.msra.mxu0 0.0
      %1442 = vmatprep.subr.mxu0 0.0
      %1443 = vmatpush1.msra.mxu0 0.0
      %1444 = vmatprep.subr.mxu0 0.0
      %1445 = vmatpush1.msra.mxu0 0.0
      %1446 = vmatprep.subr.mxu0 0.0
      %1447 = vmatpush1.msra.mxu0 0.0
      %1448 = vmatprep.subr.mxu0 0.0
      %1449 = vmatpush1.msra.mxu0 0.0
      %1450 = vmatprep.subr.mxu0 0.0
      %1451 = vmatpush1.msra.mxu0 0.0
      %1452 = vmatprep.subr.mxu0 0.0
      %1453 = vmatpush1.msra.mxu0 0.0
      %1454 = vmatprep.subr.mxu0 0.0
      %1455 = vmatpush1.msra.mxu0 0.0
      %1456 = vmatprep.subr.mxu0 0.0
      %1457 = vmatpush1.msra.mxu0 0.0
      %1458 = vmatprep.subr.mxu0 0.0
      %1459 = vmatpush1.msra.mxu0 0.0
      %1460 = vmatprep.mubr.f32.mxu0 0.0
      %1461 = vmatmul.mubr.f32.gmra.mrb[0].mxu0 %v1394
      %v1462 = vpop.f32.mrb[0].mxu0
      %v1463 = vadd.f32 %v1391, %v1462
      %v1464 = vpop.f32.mrb[0].mxu0
      %1465 = vdwg.mxu0
      %1467 = vset.pattern.permute.xlu0 0
      %1468 = vperm.xlu0 %1467, %v1183
      %v1469 = vpop.permute.xlu0 %1468
      %v1471 = vmul.f32 %v1469, %v1463
      %v1472 = vand.u32 2147483647, %v1471
      %vm1473 = vcmp.le.f32.partialorder %v1472, 0.7853982
      %vm1474 = vcmp.lt.s32.totalorder %v1471, 0
      %v1475 = vand.u32 %v1471, 2139095040
      %v1476 = vshrl.u32 %v1475, 23
      %v1477 = vsub.s32 %v1476, 127
      %v1478 = vand.u32 2147483647, %v1471
      %v1479 = vand.u32 %v1478, 8388607
      %v1480 = vor.u32 %v1479, 8388608
      %v1481 = vsub.s32 0, %v1480
      %v1482 = vadd.s32 %v1477, 1
      %vm1483 = vcmp.gt.s32.totalorder %v1482, 0
      %v1484 = vsel %vm1483, %v1482, 0
      %v1485 = vshrl.u32 %v1484, 5
      %v1486 = vand.u32 %v1484, 31
      %v1487 = vsub.s32 32, %v1486
      %v1488 = vshrl.u32 683565275, %v1487
      %v1489 = vshll.u32 683565275, %v1486
      %v1490 = vshrl.u32 2475754826, %v1487
      %v1491 = vor.u32 %v1489, %v1490
      %v1492 = vshll.u32 2475754826, %v1486
      %v1493 = vshrl.u32 2131351028, %v1487
      %v1494 = vor.u32 %v1492, %v1493
      %v1495 = vshll.u32 2131351028, %v1486
      %v1496 = vshrl.u32 2102212464, %v1487
      %v1497 = vor.u32 %v1495, %v1496
      %v1498 = vshll.u32 2102212464, %v1486
      %v1499 = vshrl.u32 920167782, %v1487
      %v1500 = vor.u32 %v1498, %v1499
      %v1501 = vshll.u32 920167782, %v1486
      %v1502 = vshrl.u32 1326507024, %v1487
      %v1503 = vor.u32 %v1501, %v1502
      %vm1504 = vcmp.lt.s32.totalorder %v1485, 1
      %vm1505 = vcmp.lt.s32.totalorder %v1485, 2
      %vm1506 = vcmp.lt.s32.totalorder %v1485, 3
      %vm1507 = vcmp.lt.s32.totalorder %v1485, 4
      %v1508 = vsel %vm1504, %v1488, %v1491
      %v1509 = vsel %vm1507, %v1497, 2102212464
      %v1510 = vsel %vm1506, %v1494, %v1509
      %v1511 = vsel %vm1505, %v1508, %v1510
      %v1512 = vsel %vm1504, %v1491, %v1494
      %v1513 = vsel %vm1507, %v1500, 920167782
      %v1514 = vsel %vm1506, %v1497, %v1513
      %v1515 = vsel %vm1505, %v1512, %v1514
      %v1516 = vsel %vm1504, %v1494, %v1497
      %v1517 = vsel %vm1507, %v1503, 1326507024
      %v1518 = vsel %vm1506, %v1500, %v1517
      %v1519 = vsel %vm1505, %v1516, %v1518
      %v1520 = vshll.u32 %v1480, 8
      %v1521 = vmul.u32.u64.compose %v1520, %v1519
      %v1522 = vextract.low.u32 %v1521
      %v1523 = vextract.high.u32 %v1521
      %v1524 = vmul.u32.u64.compose %v1520, %v1515
      %v1525 = vextract.low.u32 %v1524
      %v1526 = vextract.high.u32 %v1524
      %v1527 = vmul.u32 %v1520, %v1511
      %v1528 = vadd.s32 %v1523, %v1525
      %vm1529 = vc.u32 %v1523, %v1525
      %v1530 = vadd.s32 %v1526, 1
      %v1531 = vsel %vm1529, %v1530, %v1526
      %v1532 = vadd.s32 %v1527, %v1531
      %v1533 = vadd.s32 %v1532, 536870912
      %v1534 = vshrl.u32 %v1533, 30
      %v1535 = vshll.u32 %v1534, 30
      %v1536 = vsub.s32 %v1532, %v1535
      %vm1537 = vcmp.lt.s32.totalorder %v1536, 0
      %v1538 = vsub.s32 0, %v1536
      %v1539 = vsel %vm1537, %v1538, %v1536
      %v1540 = vclz %v1539
      %v1541 = vsub.s32 %v1540, 2
      %vm1542 = vcmp.gt.s32.totalorder 0, %v1541
      %v1543 = vsel %vm1542, 0, %v1541
      %v1544 = vsub.s32 32, %v1543
      %v1545 = vshll.u32 %v1536, %v1543
      %v1546 = vshrl.u32 %v1528, %v1544
      %v1547 = vor.u32 %v1545, %v1546
      %v1548 = vsub.s32 4294967266, %v1543
      %v1549 = vadd.s32 %v1548, 127
      %v1550 = vshll.u32 %v1549, 23
      %v1551 = vor.u32 4788187, %v1550
      %v1552 = vand.u32 2147483647, %v1551
      %v1554 = vcvt.s32.f32 %v1547
      %v1555 = vmul.f32 %v1554, %v1552
      %v1556 = vxor.u32 %v1555, 2147483648
      %v1557 = vsel %vm1474, %v1556, %v1555
      %v1558 = vsub.s32 4, %v1534
      %v1559 = vsel %vm1474, %v1558, %v1534
      %v1560 = vsel %vm1473, %v1471, %v1557
      %v1561 = vsel %vm1473, 0, %v1559
      %v1562 = vcosq.f32.pop %v1560
      %v1563 = vsinq.f32.pop %v1560
      %vm1564 = vweird.f32 %v1471
      %v1565 = vadd.s32 %v1561, 3
      %v1566 = vand.u32 %v1565, 3
      %vm1567 = vcmp.lt.s32.totalorder %v1566, 2
      %vm1568 = vcmp.eq.s32.totalorder %v1566, 0
      %v1569 = vxor.u32 %v1563, 2147483648
      %v1570 = vsel %vm1568, %v1562, %v1569
      %vm1571 = vcmp.eq.s32.totalorder %v1566, 2
      %v1572 = vxor.u32 %v1562, 2147483648
      %v1573 = vsel %vm1571, %v1572, %v1563
      %v1574 = vsel %vm1567, %v1570, %v1573
      %v1575 = vsel %vm1564, nan, %v1574
      %1577 = vset.pattern.permute.xlu0 0
      %1578 = vperm.xlu0 %1577, %v1185
      %v1579 = vpop.permute.xlu0 %1578
      %v1581 = vmul.f32 %v1579, %v1575
      %v1582 = vmul.f32 %v1581, %v1575
      %v1583 = vadd.f32 %v1463, %v1582
      %s1584 = scalar_lea.vmem %s3, 16
      %v1585 = vld [vmem:[%s1584] sm:$0xff]
      %1587 = vset.pattern.permute.xlu0 0
      %1588 = vperm.xlu0 %1587, %v1187
      %v1589 = vpop.permute.xlu0 %1588
      %v1592 = vsel %vm612, %v1585, 0
      %1594 = vmatprep.subr.mxu0 0.0
      %1595 = vmatpush1.msra.mxu0 %v1583
      %1596 = vmatprep.subr.mxu0 0.0
      %1597 = vmatpush1.msra.mxu0 0.0
      %1598 = vmatprep.subr.mxu0 0.0
      %1599 = vmatpush1.msra.mxu0 0.0
      %1600 = vmatprep.subr.mxu0 0.0
      %1601 = vmatpush1.msra.mxu0 0.0
      %1602 = vmatprep.subr.mxu0 0.0
      %1603 = vmatpush1.msra.mxu0 0.0
      %1604 = vmatprep.subr.mxu0 0.0
      %1605 = vmatpush1.msra.mxu0 0.0
      %1606 = vmatprep.subr.mxu0 0.0
      %1607 = vmatpush1.msra.mxu0 0.0
      %1608 = vmatprep.subr.mxu0 0.0
      %1609 = vmatpush1.msra.mxu0 0.0
      %1610 = vmatprep.subr.mxu0 0.0
      %1611 = vmatpush1.msra.mxu0 0.0
      %1612 = vmatprep.subr.mxu0 0.0
      %1613 = vmatpush1.msra.mxu0 0.0
      %1614 = vmatprep.subr.mxu0 0.0
      %1615 = vmatpush1.msra.mxu0 0.0
      %1616 = vmatprep.subr.mxu0 0.0
      %1617 = vmatpush1.msra.mxu0 0.0
      %1618 = vmatprep.subr.mxu0 0.0
      %1619 = vmatpush1.msra.mxu0 0.0
      %1620 = vmatprep.subr.mxu0 0.0
      %1621 = vmatpush1.msra.mxu0 0.0
      %1622 = vmatprep.subr.mxu0 0.0
      %1623 = vmatpush1.msra.mxu0 0.0
      %1624 = vmatprep.subr.mxu0 0.0
      %1625 = vmatpush1.msra.mxu0 0.0
      %1626 = vmatprep.subr.mxu0 0.0
      %1627 = vmatpush1.msra.mxu0 0.0
      %1628 = vmatprep.subr.mxu0 0.0
      %1629 = vmatpush1.msra.mxu0 0.0
      %1630 = vmatprep.subr.mxu0 0.0
      %1631 = vmatpush1.msra.mxu0 0.0
      %1632 = vmatprep.subr.mxu0 0.0
      %1633 = vmatpush1.msra.mxu0 0.0
      %1634 = vmatprep.subr.mxu0 0.0
      %1635 = vmatpush1.msra.mxu0 0.0
      %1636 = vmatprep.subr.mxu0 0.0
      %1637 = vmatpush1.msra.mxu0 0.0
      %1638 = vmatprep.subr.mxu0 0.0
      %1639 = vmatpush1.msra.mxu0 0.0
      %1640 = vmatprep.subr.mxu0 0.0
      %1641 = vmatpush1.msra.mxu0 0.0
      %1642 = vmatprep.subr.mxu0 0.0
      %1643 = vmatpush1.msra.mxu0 0.0
      %1644 = vmatprep.subr.mxu0 0.0
      %1645 = vmatpush1.msra.mxu0 0.0
      %1646 = vmatprep.subr.mxu0 0.0
      %1647 = vmatpush1.msra.mxu0 0.0
      %1648 = vmatprep.subr.mxu0 0.0
      %1649 = vmatpush1.msra.mxu0 0.0
      %1650 = vmatprep.subr.mxu0 0.0
      %1651 = vmatpush1.msra.mxu0 0.0
      %1652 = vmatprep.subr.mxu0 0.0
      %1653 = vmatpush1.msra.mxu0 0.0
      %1654 = vmatprep.subr.mxu0 0.0
      %1655 = vmatpush1.msra.mxu0 0.0
      %1656 = vmatprep.subr.mxu0 0.0
      %1657 = vmatpush1.msra.mxu0 0.0
      %1658 = vmatprep.mubr.f32.mxu0 0.0
      %1659 = vmatmul.mubr.f32.gmra.mrb[0].mxu0 %v1592
      %v1660 = vpop.f32.mrb[0].mxu0
      %v1661 = vadd.f32 %v1589, %v1660
      %v1662 = vpop.f32.mrb[0].mxu0
      %1663 = vdwg.mxu0
      %v1664 = vadd.f32 %v1175, %v1661
      %1665 = vst [vmem:[%s192] sm:$0xff] %v1664
      %p1666 = scmp.lt.s32.totalorder %s15, 1
      %s1667 = scalar_select %p1666, %s15, 1
      %s1668 = smul.addr %s1667, 8
      %s1669 = scalar_lea.vmem %s4, %s1668
      // Predicated region
      $region37: #{encoder_block_forward.2} parent=35 // pred_check
        %p1670 = pneg %p122
      $region38: #{encoder_block_forward.2} parent=35 // pred_check_branch
        %1672 = sbr.rel (%p1670) target = $region40
      $region39: #{encoder_block_forward.2} parent=35 // pred_region
        _
      $region40: #{encoder_block_forward.2} parent=35 // pred_fallthru
        _
    $region36: #{encoder_block_forward.2} parent=5 // pred_fallthru
      _
    %p1673 = scmp.le.s32.totalorder 2, %s10
    // Predicated region
    $region41: #{encoder_block_forward.2} parent=5 // pred_check
      %p1674 = pneg %p1673
    $region42: #{encoder_block_forward.2} parent=5 // pred_check_branch
      %1676 = sbr.rel (%p1674) target = $region44
    $region43: #{encoder_block_forward.2} parent=5 // pred_region
      %s1677 = ssub.s32 %s10, 2
      // Predicated region
      $region45: #{encoder_block_forward.2} parent=43 // pred_check
        %p1678 = pneg %p128
      $region46: #{encoder_block_forward.2} parent=43 // pred_check_branch
        %1680 = sbr.rel (%p1678) target = $region48
      $region47: #{encoder_block_forward.2} parent=43 // pred_region
        %p1681 = scmp.lt.s32.totalorder %s16, 1
        %s1682 = scalar_select %p1681, %s16, 1
        %s1683 = smul.addr %s1682, 8
        %s1684 = scalar_lea.vmem %s4, %s1683
      $region48: #{encoder_block_forward.2} parent=43 // pred_fallthru
        _
    $region44: #{encoder_block_forward.2} parent=5 // pred_fallthru
      _
  $region6: #{encoder_block_forward.2} parent=0 // loop_footer
    %s14 = sadd.s32 1, %s10
  $region7: #{encoder_block_forward.2} parent=0 // loop_footer_branch
    %9 = sbr.rel target = $region3
  $region8: #{encoder_block_forward.2} parent=0 // loop_exit
    _

</llo_original>
